<compile_context>
chip_gen: v7x
topology: tpu7x:2x2x1
jax: 0.10.0
libtpu: 0.0.40
codegen_flags: <defaults>
</compile_context>

<pallas_src>
import functools

import jax
import jax.numpy as jnp
from jax.experimental import pallas as pl
from jax.experimental.pallas import tpu as pltpu


def _attention_kernel(x_ref, wq_ref, wk_ref, wv_ref, wo_ref, bo_ref, o_ref,
                      k_sc, v_sc, q_sc, ctx_sc, *, scale, tq, num_heads, head_dim):
    """One grid step = (batch b, query tile qi).  All heads processed in-kernel."""
    qi = pl.program_id(1)
    H, D = num_heads, head_dim

    # K/V projection for the whole sequence, ONCE per batch element, as two
    # full-width (N, C) @ (C, C) matmuls.  Head h lives in columns h*D:(h+1)*D.
    @pl.when(qi == 0)
    def _project_kv():
        xb = x_ref[...]                                           # (N, C) bf16
        k_sc[...] = jnp.dot(xb, wk_ref[...],
                            preferred_element_type=jnp.float32).astype(jnp.bfloat16)
        v_sc[...] = jnp.dot(xb, wv_ref[...],
                            preferred_element_type=jnp.float32).astype(jnp.bfloat16)

    # Query tile sliced from the already-resident x block (no second x stream).
    start = pl.multiple_of(qi * tq, tq)
    xq = x_ref[pl.ds(start, tq), :]                               # (tq, C) bf16

    # Full-width Q projection for this tile; softmax scale folded in (O(tq*C)).
    q_sc[...] = (jnp.dot(xq, wq_ref[...],
                         preferred_element_type=jnp.float32) * scale
                 ).astype(jnp.bfloat16)                           # (tq, C)

    # Per-head attention.  Head operands are static lane slices of VMEM scratch.
    for h in range(H):
        sl = slice(h * D, (h + 1) * D)
        q = q_sc[:, sl]                                           # (tq, D) bf16
        k = k_sc[:, sl]                                           # (N,  D) bf16
        v = v_sc[:, sl]                                           # (N,  D) bf16

        s = jax.lax.dot_general(q, k, (((1,), (1,)), ((), ())),
                                preferred_element_type=jnp.float32)   # (tq, N)
        m = jnp.max(s, axis=-1, keepdims=True)
        p = jnp.exp(s - m)                                        # f32 softmax
        l = jnp.sum(p, axis=-1, keepdims=True)                    # (tq, 1)

        ctx = jnp.dot(p.astype(jnp.bfloat16), v,
                      preferred_element_type=jnp.float32)         # (tq, D)
        ctx = ctx * pl.reciprocal(l, approx=False)                # exact 1/rowsum
        ctx_sc[:, sl] = ctx.astype(jnp.bfloat16)

    # Output projection: ONE full-width (tq, C) @ (C, C) matmul + bias,
    # written as a single lane-dense (tq, C) slab.
    out = jnp.dot(ctx_sc[...], wo_ref[...],
                  preferred_element_type=jnp.float32) + bo_ref[...]
    o_ref[...] = out.astype(o_ref.dtype)


def _pick_query_tile(n, *, logit_budget_bytes=8 << 20):
    """Largest sublane-friendly tile dividing N whose f32 (tq, N) logits fit budget."""
    for cand in (512, 256, 128, 64, 32, 16, 8):
        if n % cand == 0 and cand * n * 4 <= logit_budget_bytes:
            return cand
    return n  # block == full dim is always legal


def _vmem_limit_bytes():
    """Generation-aware scoped-VMEM budget (v5e/v6e 128 MiB, v7x 64 MiB per TC)."""
    try:
        cap = int(pltpu.get_tpu_info().vmem_capacity_bytes)
    except Exception:
        cap = 64 * 1024 * 1024
    return int(max(32 * 1024 * 1024, min(cap * 3 // 4, 100 * 1024 * 1024)))


def attention_pallas(x, w_qkv, w_proj, b_proj, *, num_heads, scale, query_tile=None):
    B, N, C = x.shape
    assert C % num_heads == 0, "dim must be divisible by num_heads"
    H = num_heads
    D = C // H

    # Host-side bf16 casts (halve HBM traffic / VMEM blocks; f32 accumulation in-kernel).
    bf = jnp.bfloat16
    x_b = x.astype(bf)
    w_q = w_qkv[:, 0 * C:1 * C].astype(bf)      # (C, C), head h at cols h*D:(h+1)*D
    w_k = w_qkv[:, 1 * C:2 * C].astype(bf)
    w_v = w_qkv[:, 2 * C:3 * C].astype(bf)
    w_o = w_proj.astype(bf)                     # (C, C)
    b_o = b_proj.reshape(1, C).astype(jnp.float32)

    tq = query_tile if query_tile is not None else _pick_query_tile(N)
    assert N % tq == 0, "query tile must divide sequence length"
    nq = N // tq
    grid = (B, nq)

    # Cost estimate reflecting the actual (non-redundant) work.
    flops = (2 * B * N * C * (3 * C)            # qkv projection (K/V once per batch)
             + 4 * B * H * N * N * D            # QK^T and PV
             + 2 * B * N * C * C)               # output projection
    transcendentals = B * H * N * N             # softmax exp
    bytes_accessed = (x_b.size * 2                                          # x, bf16
                      + (w_q.size + w_k.size + w_v.size + w_o.size) * 2    # weights, bf16
                      + b_o.size * 4
                      + B * N * C * x.dtype.itemsize)                      # output

    kernel = functools.partial(_attention_kernel, scale=scale, tq=tq,
                               num_heads=H, head_dim=D)

    return pl.pallas_call(
        kernel,
        out_shape=jax.ShapeDtypeStruct((B, N, C), x.dtype),
        grid_spec=pltpu.PrefetchScalarGridSpec(
            num_scalar_prefetch=0,
            grid=grid,
            in_specs=[
                pl.BlockSpec((None, N, C), lambda b, qi: (b, 0, 0)),  # x, resident per b
                pl.BlockSpec((C, C), lambda b, qi: (0, 0)),           # W_q (DMA'd once)
                pl.BlockSpec((C, C), lambda b, qi: (0, 0)),           # W_k
                pl.BlockSpec((C, C), lambda b, qi: (0, 0)),           # W_v
                pl.BlockSpec((C, C), lambda b, qi: (0, 0)),           # W_proj
                pl.BlockSpec((1, C), lambda b, qi: (0, 0)),           # b_proj
            ],
            out_specs=pl.BlockSpec((None, tq, C), lambda b, qi: (b, qi, 0)),
            scratch_shapes=[
                pltpu.VMEM((N, C), jnp.bfloat16),    # K, all heads (per batch element)
                pltpu.VMEM((N, C), jnp.bfloat16),    # V, all heads (per batch element)
                pltpu.VMEM((tq, C), jnp.bfloat16),   # Q, all heads (current tile)
                pltpu.VMEM((tq, C), jnp.bfloat16),   # per-head contexts (current tile)
            ],
        ),
        compiler_params=pltpu.CompilerParams(
            dimension_semantics=("parallel", "arbitrary"),
            vmem_limit_bytes=_vmem_limit_bytes(),
        ),
        cost_estimate=pl.CostEstimate(
            flops=flops,
            transcendentals=transcendentals,
            bytes_accessed=bytes_accessed,
        ),
    )(x_b, w_q, w_k, w_v, w_o, b_o)


def attention_ref(x, w_qkv, w_proj, b_proj, *, num_heads, scale):
    """Pure-JAX (f32) reference mirroring the PyTorch forward."""
    B, N, C = x.shape
    D = C // num_heads
    qkv = (x @ w_qkv).reshape(B, N, 3, num_heads, D).transpose(2, 0, 3, 1, 4)
    q, k, v = qkv[0], qkv[1], qkv[2]                      # (B, H, N, D)
    attn = jnp.einsum('bhnd,bhmd->bhnm', q, k) * scale
    attn = jax.nn.softmax(attn, axis=-1)
    out = jnp.einsum('bhnm,bhmd->bhnd', attn, v)
    out = out.transpose(0, 2, 1, 3).reshape(B, N, C)
    return out @ w_proj + b_proj


def _run_case(key, B, N, C, num_heads, *, query_tile=None, atol=2e-2, rtol=2e-2):
    head_dim = C // num_heads
    scale = head_dim ** (-0.5)
    kx, kqkv, kproj, kb = jax.random.split(key, 4)
    x = jax.random.normal(kx, (B, N, C), dtype=jnp.float32)
    w_qkv = jax.random.normal(kqkv, (C, 3 * C), dtype=jnp.float32) * 0.05
    w_proj = jax.random.normal(kproj, (C, C), dtype=jnp.float32) * 0.05
    b_proj = jax.random.normal(kb, (C,), dtype=jnp.float32) * 0.05

    out = attention_pallas(x, w_qkv, w_proj, b_proj,
                           num_heads=num_heads, scale=scale, query_tile=query_tile)
    out = jax.block_until_ready(out)
    ref = attention_ref(x, w_qkv, w_proj, b_proj, num_heads=num_heads, scale=scale)
    assert out.shape == (B, N, C)
    # bf16 MXU operands vs f32 reference -> loose tolerance
    assert jnp.allclose(out, ref, atol=atol, rtol=rtol), \
        f"mismatch vs pure-JAX reference (B={B}, N={N}, C={C}, H={num_heads})"


if __name__ == "__main__":
    key = jax.random.PRNGKey(0)
    k1, k2 = jax.random.split(key)

    # Small case matching the module defaults (dim=32, num_heads=8 -> head_dim=4).
    _run_case(k1, B=2, N=8, C=32, num_heads=8, atol=2e-2, rtol=2e-2)

    # Larger case: head_dim=64, multiple query tiles (exercises the K/V-scratch reuse
    # across query tiles and the (8,128)-tiled paths).
    _run_case(k2, B=1, N=256, C=256, num_heads=4, query_tile=128, atol=3e-2, rtol=3e-2)

    print("KERNEL_OK")
</pallas_src>

<mosaic_0001>
module attributes {stable_mosaic.version = 11 : i64} {
  func.func @_attention_kernel(%arg0: i32, %arg1: i32, %arg2: memref<1x8x32xbf16, #tpu.memory_space<vmem>>, %arg3: memref<32x32xbf16, #tpu.memory_space<vmem>>, %arg4: memref<32x32xbf16, #tpu.memory_space<vmem>>, %arg5: memref<32x32xbf16, #tpu.memory_space<vmem>>, %arg6: memref<32x32xbf16, #tpu.memory_space<vmem>>, %arg7: memref<1x32xf32, #tpu.memory_space<vmem>>, %arg8: memref<1x8x32xf32, #tpu.memory_space<vmem>>, %arg9: memref<8x32xbf16, #tpu.memory_space<vmem>>, %arg10: memref<8x32xbf16, #tpu.memory_space<vmem>>, %arg11: memref<8x32xbf16, #tpu.memory_space<vmem>>, %arg12: memref<8x32xbf16, #tpu.memory_space<vmem>>) attributes {dimension_semantics = [#tpu.dimension_semantics<parallel>, #tpu.dimension_semantics<arbitrary>], iteration_bounds = array<i64: 2, 1>, scalar_prefetch = 0 : i64, scratch_operands = 4 : i64, tpu.core_type = #tpu.core_type<tc>, window_params = [{transform_indices = @transform_0, window_bounds = array<i64: 1, 8, 32>}, {pipeline_mode = #tpu.pipeline_mode<synchronous>, transform_indices = @transform_1, window_bounds = array<i64: 32, 32>}, {pipeline_mode = #tpu.pipeline_mode<synchronous>, transform_indices = @transform_2, window_bounds = array<i64: 32, 32>}, {pipeline_mode = #tpu.pipeline_mode<synchronous>, transform_indices = @transform_3, window_bounds = array<i64: 32, 32>}, {pipeline_mode = #tpu.pipeline_mode<synchronous>, transform_indices = @transform_4, window_bounds = array<i64: 32, 32>}, {pipeline_mode = #tpu.pipeline_mode<synchronous>, transform_indices = @transform_5, window_bounds = array<i64: 1, 32>}, {transform_indices = @transform_6, window_bounds = array<i64: 1, 8, 32>}]} {
    %c0_i32 = arith.constant 0 : i32
    %0 = arith.cmpi eq, %arg1, %c0_i32 : i32
    %1 = arith.extui %0 : i1 to i32
    %c0_i32_0 = arith.constant 0 : i32
    %2 = arith.cmpi ne, %1, %c0_i32_0 : i32
    scf.if %2 {
      %c0_106 = arith.constant 0 : index
      %c0_107 = arith.constant 0 : index
      %c0_108 = arith.constant 0 : index
      %167 = vector.load %arg2[%c0_106, %c0_107, %c0_108] : memref<1x8x32xbf16, #tpu.memory_space<vmem>>, vector<1x8x32xbf16>
      %168 = vector.shape_cast %167 : vector<1x8x32xbf16> to vector<8x32xbf16>
      %c0_109 = arith.constant 0 : index
      %c0_110 = arith.constant 0 : index
      %169 = vector.load %arg4[%c0_109, %c0_110] : memref<32x32xbf16, #tpu.memory_space<vmem>>, vector<32x32xbf16>
      %cst_111 = arith.constant dense<0.000000e+00> : vector<8x32xf32>
      %170 = tpu.matmul %168, %169, %cst_111 {dimension_numbers = #tpu.dot_dimension_numbers<[1], [0], [0], [1], [0, 0, 1, 1], [], []>} : vector<8x32xbf16>, vector<32x32xbf16>, vector<8x32xf32> -> vector<8x32xf32>
      %171 = arith.truncf %170 : vector<8x32xf32> to vector<8x32xbf16>
      %c0_112 = arith.constant 0 : index
      %c0_113 = arith.constant 0 : index
      %172 = vector.load %arg9[%c0_112, %c0_113] : memref<8x32xbf16, #tpu.memory_space<vmem>>, vector<8x32xbf16>
      tpu.vector_store %arg9[%c0_112, %c0_113], %171 {strides = array<i32>} : memref<8x32xbf16, #tpu.memory_space<vmem>>, vector<8x32xbf16>,
      %c0_114 = arith.constant 0 : index
      %c0_115 = arith.constant 0 : index
      %173 = vector.load %arg5[%c0_114, %c0_115] : memref<32x32xbf16, #tpu.memory_space<vmem>>, vector<32x32xbf16>
      %cst_116 = arith.constant dense<0.000000e+00> : vector<8x32xf32>
      %174 = tpu.matmul %168, %173, %cst_116 {dimension_numbers = #tpu.dot_dimension_numbers<[1], [0], [0], [1], [0, 0, 1, 1], [], []>} : vector<8x32xbf16>, vector<32x32xbf16>, vector<8x32xf32> -> vector<8x32xf32>
      %175 = arith.truncf %174 : vector<8x32xf32> to vector<8x32xbf16>
      %c0_117 = arith.constant 0 : index
      %c0_118 = arith.constant 0 : index
      %176 = vector.load %arg10[%c0_117, %c0_118] : memref<8x32xbf16, #tpu.memory_space<vmem>>, vector<8x32xbf16>
      tpu.vector_store %arg10[%c0_117, %c0_118], %175 {strides = array<i32>} : memref<8x32xbf16, #tpu.memory_space<vmem>>, vector<8x32xbf16>,
    } else {
    }
    %c8_i32 = arith.constant 8 : i32
    %3 = arith.muli %arg1, %c8_i32 : i32
    %4 = tpu.assume_multiple %3, 8 : i32
    %c0 = arith.constant 0 : index
    %5 = arith.index_cast %4 : i32 to index
    %c0_1 = arith.constant 0 : index
    %6 = vector.load %arg2[%c0, %5, %c0_1] : memref<1x8x32xbf16, #tpu.memory_space<vmem>>, vector<1x8x32xbf16>
    %7 = vector.shape_cast %6 : vector<1x8x32xbf16> to vector<8x32xbf16>
    %c0_2 = arith.constant 0 : index
    %c0_3 = arith.constant 0 : index
    %8 = vector.load %arg3[%c0_2, %c0_3] : memref<32x32xbf16, #tpu.memory_space<vmem>>, vector<32x32xbf16>
    %cst = arith.constant dense<0.000000e+00> : vector<8x32xf32>
    %9 = tpu.matmul %7, %8, %cst {dimension_numbers = #tpu.dot_dimension_numbers<[1], [0], [0], [1], [0, 0, 1, 1], [], []>} : vector<8x32xbf16>, vector<32x32xbf16>, vector<8x32xf32> -> vector<8x32xf32>
    %cst_4 = arith.constant 5.000000e-01 : f32
    %10 = vector.broadcast %cst_4 : f32 to vector<8x32xf32>
    %11 = arith.mulf %9, %10 : vector<8x32xf32>
    %12 = arith.truncf %11 : vector<8x32xf32> to vector<8x32xbf16>
    %c0_5 = arith.constant 0 : index
    %c0_6 = arith.constant 0 : index
    %13 = vector.load %arg11[%c0_5, %c0_6] : memref<8x32xbf16, #tpu.memory_space<vmem>>, vector<8x32xbf16>
    tpu.vector_store %arg11[%c0_5, %c0_6], %12 {strides = array<i32>} : memref<8x32xbf16, #tpu.memory_space<vmem>>, vector<8x32xbf16>,
    %c0_7 = arith.constant 0 : index
    %c0_8 = arith.constant 0 : index
    %14 = vector.load %arg11[%c0_7, %c0_8] : memref<8x32xbf16, #tpu.memory_space<vmem>>, vector<8x4xbf16>
    %c0_9 = arith.constant 0 : index
    %c0_10 = arith.constant 0 : index
    %15 = vector.load %arg9[%c0_9, %c0_10] : memref<8x32xbf16, #tpu.memory_space<vmem>>, vector<8x4xbf16>
    %c0_11 = arith.constant 0 : index
    %c0_12 = arith.constant 0 : index
    %16 = vector.load %arg10[%c0_11, %c0_12] : memref<8x32xbf16, #tpu.memory_space<vmem>>, vector<8x4xbf16>
    %cst_13 = arith.constant dense<0.000000e+00> : vector<8x8xf32>
    %17 = tpu.matmul %14, %15, %cst_13 {dimension_numbers = #tpu.dot_dimension_numbers<[1], [1], [0], [0], [0, 0, 1, 0], [], []>} : vector<8x4xbf16>, vector<8x4xbf16>, vector<8x8xf32> -> vector<8x8xf32>
    %cst_14 = arith.constant dense<0xFF800000> : vector<8xf32>
    %18 = vector.multi_reduction <maximumf>, %17, %cst_14 [1] : vector<8x8xf32> to vector<8xf32>
    %19 = vector.shape_cast %18 : vector<8xf32> to vector<8x1xf32>
    %20 = vector.broadcast %19 : vector<8x1xf32> to vector<8x8xf32>
    %21 = arith.subf %17, %20 : vector<8x8xf32>
    %22 = math.exp %21 : vector<8x8xf32>
    %cst_15 = arith.constant dense<0.000000e+00> : vector<8xf32>
    %23 = vector.multi_reduction <add>, %22, %cst_15 [1] : vector<8x8xf32> to vector<8xf32>
    %24 = vector.shape_cast %23 : vector<8xf32> to vector<8x1xf32>
    %25 = arith.truncf %22 : vector<8x8xf32> to vector<8x8xbf16>
    %cst_16 = arith.constant dense<0.000000e+00> : vector<8x4xf32>
    %26 = tpu.matmul %25, %16, %cst_16 {dimension_numbers = #tpu.dot_dimension_numbers<[1], [0], [0], [1], [0, 0, 1, 1], [], []>} : vector<8x8xbf16>, vector<8x4xbf16>, vector<8x4xf32> -> vector<8x4xf32>
    %27 = tpu.reciprocal %24 : vector<8x1xf32> -> vector<8x1xf32>
    %28 = vector.broadcast %27 : vector<8x1xf32> to vector<8x4xf32>
    %29 = arith.mulf %26, %28 : vector<8x4xf32>
    %30 = arith.truncf %29 : vector<8x4xf32> to vector<8x4xbf16>
    %c0_17 = arith.constant 0 : index
    %c0_18 = arith.constant 0 : index
    %31 = vector.load %arg12[%c0_17, %c0_18] : memref<8x32xbf16, #tpu.memory_space<vmem>>, vector<8x4xbf16>
    tpu.vector_store %arg12[%c0_17, %c0_18], %30 {strides = array<i32>} : memref<8x32xbf16, #tpu.memory_space<vmem>>, vector<8x4xbf16>,
    %c0_19 = arith.constant 0 : index
    %c4 = arith.constant 4 : index
    %32 = vector.load %arg11[%c0_19, %c4] : memref<8x32xbf16, #tpu.memory_space<vmem>>, vector<8x4xbf16>
    %c0_20 = arith.constant 0 : index
    %c4_21 = arith.constant 4 : index
    %33 = vector.load %arg9[%c0_20, %c4_21] : memref<8x32xbf16, #tpu.memory_space<vmem>>, vector<8x4xbf16>
    %c0_22 = arith.constant 0 : index
    %c4_23 = arith.constant 4 : index
    %34 = vector.load %arg10[%c0_22, %c4_23] : memref<8x32xbf16, #tpu.memory_space<vmem>>, vector<8x4xbf16>
    %cst_24 = arith.constant dense<0.000000e+00> : vector<8x8xf32>
    %35 = tpu.matmul %32, %33, %cst_24 {dimension_numbers = #tpu.dot_dimension_numbers<[1], [1], [0], [0], [0, 0, 1, 0], [], []>} : vector<8x4xbf16>, vector<8x4xbf16>, vector<8x8xf32> -> vector<8x8xf32>
    %cst_25 = arith.constant dense<0xFF800000> : vector<8xf32>
    %36 = vector.multi_reduction <maximumf>, %35, %cst_25 [1] : vector<8x8xf32> to vector<8xf32>
    %37 = vector.shape_cast %36 : vector<8xf32> to vector<8x1xf32>
    %38 = vector.broadcast %37 : vector<8x1xf32> to vector<8x8xf32>
    %39 = arith.subf %35, %38 : vector<8x8xf32>
    %40 = math.exp %39 : vector<8x8xf32>
    %cst_26 = arith.constant dense<0.000000e+00> : vector<8xf32>
    %41 = vector.multi_reduction <add>, %40, %cst_26 [1] : vector<8x8xf32> to vector<8xf32>
    %42 = vector.shape_cast %41 : vector<8xf32> to vector<8x1xf32>
    %43 = arith.truncf %40 : vector<8x8xf32> to vector<8x8xbf16>
    %cst_27 = arith.constant dense<0.000000e+00> : vector<8x4xf32>
    %44 = tpu.matmul %43, %34, %cst_27 {dimension_numbers = #tpu.dot_dimension_numbers<[1], [0], [0], [1], [0, 0, 1, 1], [], []>} : vector<8x8xbf16>, vector<8x4xbf16>, vector<8x4xf32> -> vector<8x4xf32>
    %45 = tpu.reciprocal %42 : vector<8x1xf32> -> vector<8x1xf32>
    %46 = vector.broadcast %45 : vector<8x1xf32> to vector<8x4xf32>
    %47 = arith.mulf %44, %46 : vector<8x4xf32>
    %48 = arith.truncf %47 : vector<8x4xf32> to vector<8x4xbf16>
    %c0_28 = arith.constant 0 : index
    %c4_29 = arith.constant 4 : index
    %49 = vector.load %arg12[%c0_28, %c4_29] : memref<8x32xbf16, #tpu.memory_space<vmem>>, vector<8x4xbf16>
    tpu.vector_store %arg12[%c0_28, %c4_29], %48 {strides = array<i32>} : memref<8x32xbf16, #tpu.memory_space<vmem>>, vector<8x4xbf16>,
    %c0_30 = arith.constant 0 : index
    %c8 = arith.constant 8 : index
    %50 = vector.load %arg11[%c0_30, %c8] : memref<8x32xbf16, #tpu.memory_space<vmem>>, vector<8x4xbf16>
    %c0_31 = arith.constant 0 : index
    %c8_32 = arith.constant 8 : index
    %51 = vector.load %arg9[%c0_31, %c8_32] : memref<8x32xbf16, #tpu.memory_space<vmem>>, vector<8x4xbf16>
    %c0_33 = arith.constant 0 : index
    %c8_34 = arith.constant 8 : index
    %52 = vector.load %arg10[%c0_33, %c8_34] : memref<8x32xbf16, #tpu.memory_space<vmem>>, vector<8x4xbf16>
    %cst_35 = arith.constant dense<0.000000e+00> : vector<8x8xf32>
    %53 = tpu.matmul %50, %51, %cst_35 {dimension_numbers = #tpu.dot_dimension_numbers<[1], [1], [0], [0], [0, 0, 1, 0], [], []>} : vector<8x4xbf16>, vector<8x4xbf16>, vector<8x8xf32> -> vector<8x8xf32>
    %cst_36 = arith.constant dense<0xFF800000> : vector<8xf32>
    %54 = vector.multi_reduction <maximumf>, %53, %cst_36 [1] : vector<8x8xf32> to vector<8xf32>
    %55 = vector.shape_cast %54 : vector<8xf32> to vector<8x1xf32>
    %56 = vector.broadcast %55 : vector<8x1xf32> to vector<8x8xf32>
    %57 = arith.subf %53, %56 : vector<8x8xf32>
    %58 = math.exp %57 : vector<8x8xf32>
    %cst_37 = arith.constant dense<0.000000e+00> : vector<8xf32>
    %59 = vector.multi_reduction <add>, %58, %cst_37 [1] : vector<8x8xf32> to vector<8xf32>
    %60 = vector.shape_cast %59 : vector<8xf32> to vector<8x1xf32>
    %61 = arith.truncf %58 : vector<8x8xf32> to vector<8x8xbf16>
    %cst_38 = arith.constant dense<0.000000e+00> : vector<8x4xf32>
    %62 = tpu.matmul %61, %52, %cst_38 {dimension_numbers = #tpu.dot_dimension_numbers<[1], [0], [0], [1], [0, 0, 1, 1], [], []>} : vector<8x8xbf16>, vector<8x4xbf16>, vector<8x4xf32> -> vector<8x4xf32>
    %63 = tpu.reciprocal %60 : vector<8x1xf32> -> vector<8x1xf32>
    %64 = vector.broadcast %63 : vector<8x1xf32> to vector<8x4xf32>
    %65 = arith.mulf %62, %64 : vector<8x4xf32>
    %66 = arith.truncf %65 : vector<8x4xf32> to vector<8x4xbf16>
    %c0_39 = arith.constant 0 : index
    %c8_40 = arith.constant 8 : index
    %67 = vector.load %arg12[%c0_39, %c8_40] : memref<8x32xbf16, #tpu.memory_space<vmem>>, vector<8x4xbf16>
    tpu.vector_store %arg12[%c0_39, %c8_40], %66 {strides = array<i32>} : memref<8x32xbf16, #tpu.memory_space<vmem>>, vector<8x4xbf16>,
    %c0_41 = arith.constant 0 : index
    %c12 = arith.constant 12 : index
    %68 = vector.load %arg11[%c0_41, %c12] : memref<8x32xbf16, #tpu.memory_space<vmem>>, vector<8x4xbf16>
    %c0_42 = arith.constant 0 : index
    %c12_43 = arith.constant 12 : index
    %69 = vector.load %arg9[%c0_42, %c12_43] : memref<8x32xbf16, #tpu.memory_space<vmem>>, vector<8x4xbf16>
    %c0_44 = arith.constant 0 : index
    %c12_45 = arith.constant 12 : index
    %70 = vector.load %arg10[%c0_44, %c12_45] : memref<8x32xbf16, #tpu.memory_space<vmem>>, vector<8x4xbf16>
    %cst_46 = arith.constant dense<0.000000e+00> : vector<8x8xf32>
    %71 = tpu.matmul %68, %69, %cst_46 {dimension_numbers = #tpu.dot_dimension_numbers<[1], [1], [0], [0], [0, 0, 1, 0], [], []>} : vector<8x4xbf16>, vector<8x4xbf16>, vector<8x8xf32> -> vector<8x8xf32>
    %cst_47 = arith.constant dense<0xFF800000> : vector<8xf32>
    %72 = vector.multi_reduction <maximumf>, %71, %cst_47 [1] : vector<8x8xf32> to vector<8xf32>
    %73 = vector.shape_cast %72 : vector<8xf32> to vector<8x1xf32>
    %74 = vector.broadcast %73 : vector<8x1xf32> to vector<8x8xf32>
    %75 = arith.subf %71, %74 : vector<8x8xf32>
    %76 = math.exp %75 : vector<8x8xf32>
    %cst_48 = arith.constant dense<0.000000e+00> : vector<8xf32>
    %77 = vector.multi_reduction <add>, %76, %cst_48 [1] : vector<8x8xf32> to vector<8xf32>
    %78 = vector.shape_cast %77 : vector<8xf32> to vector<8x1xf32>
    %79 = arith.truncf %76 : vector<8x8xf32> to vector<8x8xbf16>
    %cst_49 = arith.constant dense<0.000000e+00> : vector<8x4xf32>
    %80 = tpu.matmul %79, %70, %cst_49 {dimension_numbers = #tpu.dot_dimension_numbers<[1], [0], [0], [1], [0, 0, 1, 1], [], []>} : vector<8x8xbf16>, vector<8x4xbf16>, vector<8x4xf32> -> vector<8x4xf32>
    %81 = tpu.reciprocal %78 : vector<8x1xf32> -> vector<8x1xf32>
    %82 = vector.broadcast %81 : vector<8x1xf32> to vector<8x4xf32>
    %83 = arith.mulf %80, %82 : vector<8x4xf32>
    %84 = arith.truncf %83 : vector<8x4xf32> to vector<8x4xbf16>
    %c0_50 = arith.constant 0 : index
    %c12_51 = arith.constant 12 : index
    %85 = vector.load %arg12[%c0_50, %c12_51] : memref<8x32xbf16, #tpu.memory_space<vmem>>, vector<8x4xbf16>
    tpu.vector_store %arg12[%c0_50, %c12_51], %84 {strides = array<i32>} : memref<8x32xbf16, #tpu.memory_space<vmem>>, vector<8x4xbf16>,
    %c0_52 = arith.constant 0 : index
    %c16 = arith.constant 16 : index
    %86 = vector.load %arg11[%c0_52, %c16] : memref<8x32xbf16, #tpu.memory_space<vmem>>, vector<8x4xbf16>
    %c0_53 = arith.constant 0 : index
    %c16_54 = arith.constant 16 : index
    %87 = vector.load %arg9[%c0_53, %c16_54] : memref<8x32xbf16, #tpu.memory_space<vmem>>, vector<8x4xbf16>
    %c0_55 = arith.constant 0 : index
    %c16_56 = arith.constant 16 : index
    %88 = vector.load %arg10[%c0_55, %c16_56] : memref<8x32xbf16, #tpu.memory_space<vmem>>, vector<8x4xbf16>
    %cst_57 = arith.constant dense<0.000000e+00> : vector<8x8xf32>
    %89 = tpu.matmul %86, %87, %cst_57 {dimension_numbers = #tpu.dot_dimension_numbers<[1], [1], [0], [0], [0, 0, 1, 0], [], []>} : vector<8x4xbf16>, vector<8x4xbf16>, vector<8x8xf32> -> vector<8x8xf32>
    %cst_58 = arith.constant dense<0xFF800000> : vector<8xf32>
    %90 = vector.multi_reduction <maximumf>, %89, %cst_58 [1] : vector<8x8xf32> to vector<8xf32>
    %91 = vector.shape_cast %90 : vector<8xf32> to vector<8x1xf32>
    %92 = vector.broadcast %91 : vector<8x1xf32> to vector<8x8xf32>
    %93 = arith.subf %89, %92 : vector<8x8xf32>
    %94 = math.exp %93 : vector<8x8xf32>
    %cst_59 = arith.constant dense<0.000000e+00> : vector<8xf32>
    %95 = vector.multi_reduction <add>, %94, %cst_59 [1] : vector<8x8xf32> to vector<8xf32>
    %96 = vector.shape_cast %95 : vector<8xf32> to vector<8x1xf32>
    %97 = arith.truncf %94 : vector<8x8xf32> to vector<8x8xbf16>
    %cst_60 = arith.constant dense<0.000000e+00> : vector<8x4xf32>
    %98 = tpu.matmul %97, %88, %cst_60 {dimension_numbers = #tpu.dot_dimension_numbers<[1], [0], [0], [1], [0, 0, 1, 1], [], []>} : vector<8x8xbf16>, vector<8x4xbf16>, vector<8x4xf32> -> vector<8x4xf32>
    %99 = tpu.reciprocal %96 : vector<8x1xf32> -> vector<8x1xf32>
    %100 = vector.broadcast %99 : vector<8x1xf32> to vector<8x4xf32>
    %101 = arith.mulf %98, %100 : vector<8x4xf32>
    %102 = arith.truncf %101 : vector<8x4xf32> to vector<8x4xbf16>
    %c0_61 = arith.constant 0 : index
    %c16_62 = arith.constant 16 : index
    %103 = vector.load %arg12[%c0_61, %c16_62] : memref<8x32xbf16, #tpu.memory_space<vmem>>, vector<8x4xbf16>
    tpu.vector_store %arg12[%c0_61, %c16_62], %102 {strides = array<i32>} : memref<8x32xbf16, #tpu.memory_space<vmem>>, vector<8x4xbf16>,
    %c0_63 = arith.constant 0 : index
    %c20 = arith.constant 20 : index
    %104 = vector.load %arg11[%c0_63, %c20] : memref<8x32xbf16, #tpu.memory_space<vmem>>, vector<8x4xbf16>
    %c0_64 = arith.constant 0 : index
    %c20_65 = arith.constant 20 : index
    %105 = vector.load %arg9[%c0_64, %c20_65] : memref<8x32xbf16, #tpu.memory_space<vmem>>, vector<8x4xbf16>
    %c0_66 = arith.constant 0 : index
    %c20_67 = arith.constant 20 : index
    %106 = vector.load %arg10[%c0_66, %c20_67] : memref<8x32xbf16, #tpu.memory_space<vmem>>, vector<8x4xbf16>
    %cst_68 = arith.constant dense<0.000000e+00> : vector<8x8xf32>
    %107 = tpu.matmul %104, %105, %cst_68 {dimension_numbers = #tpu.dot_dimension_numbers<[1], [1], [0], [0], [0, 0, 1, 0], [], []>} : vector<8x4xbf16>, vector<8x4xbf16>, vector<8x8xf32> -> vector<8x8xf32>
    %cst_69 = arith.constant dense<0xFF800000> : vector<8xf32>
    %108 = vector.multi_reduction <maximumf>, %107, %cst_69 [1] : vector<8x8xf32> to vector<8xf32>
    %109 = vector.shape_cast %108 : vector<8xf32> to vector<8x1xf32>
    %110 = vector.broadcast %109 : vector<8x1xf32> to vector<8x8xf32>
    %111 = arith.subf %107, %110 : vector<8x8xf32>
    %112 = math.exp %111 : vector<8x8xf32>
    %cst_70 = arith.constant dense<0.000000e+00> : vector<8xf32>
    %113 = vector.multi_reduction <add>, %112, %cst_70 [1] : vector<8x8xf32> to vector<8xf32>
    %114 = vector.shape_cast %113 : vector<8xf32> to vector<8x1xf32>
    %115 = arith.truncf %112 : vector<8x8xf32> to vector<8x8xbf16>
    %cst_71 = arith.constant dense<0.000000e+00> : vector<8x4xf32>
    %116 = tpu.matmul %115, %106, %cst_71 {dimension_numbers = #tpu.dot_dimension_numbers<[1], [0], [0], [1], [0, 0, 1, 1], [], []>} : vector<8x8xbf16>, vector<8x4xbf16>, vector<8x4xf32> -> vector<8x4xf32>
    %117 = tpu.reciprocal %114 : vector<8x1xf32> -> vector<8x1xf32>
    %118 = vector.broadcast %117 : vector<8x1xf32> to vector<8x4xf32>
    %119 = arith.mulf %116, %118 : vector<8x4xf32>
    %120 = arith.truncf %119 : vector<8x4xf32> to vector<8x4xbf16>
    %c0_72 = arith.constant 0 : index
    %c20_73 = arith.constant 20 : index
    %121 = vector.load %arg12[%c0_72, %c20_73] : memref<8x32xbf16, #tpu.memory_space<vmem>>, vector<8x4xbf16>
    tpu.vector_store %arg12[%c0_72, %c20_73], %120 {strides = array<i32>} : memref<8x32xbf16, #tpu.memory_space<vmem>>, vector<8x4xbf16>,
    %c0_74 = arith.constant 0 : index
    %c24 = arith.constant 24 : index
    %122 = vector.load %arg11[%c0_74, %c24] : memref<8x32xbf16, #tpu.memory_space<vmem>>, vector<8x4xbf16>
    %c0_75 = arith.constant 0 : index
    %c24_76 = arith.constant 24 : index
    %123 = vector.load %arg9[%c0_75, %c24_76] : memref<8x32xbf16, #tpu.memory_space<vmem>>, vector<8x4xbf16>
    %c0_77 = arith.constant 0 : index
    %c24_78 = arith.constant 24 : index
    %124 = vector.load %arg10[%c0_77, %c24_78] : memref<8x32xbf16, #tpu.memory_space<vmem>>, vector<8x4xbf16>
    %cst_79 = arith.constant dense<0.000000e+00> : vector<8x8xf32>
    %125 = tpu.matmul %122, %123, %cst_79 {dimension_numbers = #tpu.dot_dimension_numbers<[1], [1], [0], [0], [0, 0, 1, 0], [], []>} : vector<8x4xbf16>, vector<8x4xbf16>, vector<8x8xf32> -> vector<8x8xf32>
    %cst_80 = arith.constant dense<0xFF800000> : vector<8xf32>
    %126 = vector.multi_reduction <maximumf>, %125, %cst_80 [1] : vector<8x8xf32> to vector<8xf32>
    %127 = vector.shape_cast %126 : vector<8xf32> to vector<8x1xf32>
    %128 = vector.broadcast %127 : vector<8x1xf32> to vector<8x8xf32>
    %129 = arith.subf %125, %128 : vector<8x8xf32>
    %130 = math.exp %129 : vector<8x8xf32>
    %cst_81 = arith.constant dense<0.000000e+00> : vector<8xf32>
    %131 = vector.multi_reduction <add>, %130, %cst_81 [1] : vector<8x8xf32> to vector<8xf32>
    %132 = vector.shape_cast %131 : vector<8xf32> to vector<8x1xf32>
    %133 = arith.truncf %130 : vector<8x8xf32> to vector<8x8xbf16>
    %cst_82 = arith.constant dense<0.000000e+00> : vector<8x4xf32>
    %134 = tpu.matmul %133, %124, %cst_82 {dimension_numbers = #tpu.dot_dimension_numbers<[1], [0], [0], [1], [0, 0, 1, 1], [], []>} : vector<8x8xbf16>, vector<8x4xbf16>, vector<8x4xf32> -> vector<8x4xf32>
    %135 = tpu.reciprocal %132 : vector<8x1xf32> -> vector<8x1xf32>
    %136 = vector.broadcast %135 : vector<8x1xf32> to vector<8x4xf32>
    %137 = arith.mulf %134, %136 : vector<8x4xf32>
    %138 = arith.truncf %137 : vector<8x4xf32> to vector<8x4xbf16>
    %c0_83 = arith.constant 0 : index
    %c24_84 = arith.constant 24 : index
    %139 = vector.load %arg12[%c0_83, %c24_84] : memref<8x32xbf16, #tpu.memory_space<vmem>>, vector<8x4xbf16>
    tpu.vector_store %arg12[%c0_83, %c24_84], %138 {strides = array<i32>} : memref<8x32xbf16, #tpu.memory_space<vmem>>, vector<8x4xbf16>,
    %c0_85 = arith.constant 0 : index
    %c28 = arith.constant 28 : index
    %140 = vector.load %arg11[%c0_85, %c28] : memref<8x32xbf16, #tpu.memory_space<vmem>>, vector<8x4xbf16>
    %c0_86 = arith.constant 0 : index
    %c28_87 = arith.constant 28 : index
    %141 = vector.load %arg9[%c0_86, %c28_87] : memref<8x32xbf16, #tpu.memory_space<vmem>>, vector<8x4xbf16>
    %c0_88 = arith.constant 0 : index
    %c28_89 = arith.constant 28 : index
    %142 = vector.load %arg10[%c0_88, %c28_89] : memref<8x32xbf16, #tpu.memory_space<vmem>>, vector<8x4xbf16>
    %cst_90 = arith.constant dense<0.000000e+00> : vector<8x8xf32>
    %143 = tpu.matmul %140, %141, %cst_90 {dimension_numbers = #tpu.dot_dimension_numbers<[1], [1], [0], [0], [0, 0, 1, 0], [], []>} : vector<8x4xbf16>, vector<8x4xbf16>, vector<8x8xf32> -> vector<8x8xf32>
    %cst_91 = arith.constant dense<0xFF800000> : vector<8xf32>
    %144 = vector.multi_reduction <maximumf>, %143, %cst_91 [1] : vector<8x8xf32> to vector<8xf32>
    %145 = vector.shape_cast %144 : vector<8xf32> to vector<8x1xf32>
    %146 = vector.broadcast %145 : vector<8x1xf32> to vector<8x8xf32>
    %147 = arith.subf %143, %146 : vector<8x8xf32>
    %148 = math.exp %147 : vector<8x8xf32>
    %cst_92 = arith.constant dense<0.000000e+00> : vector<8xf32>
    %149 = vector.multi_reduction <add>, %148, %cst_92 [1] : vector<8x8xf32> to vector<8xf32>
    %150 = vector.shape_cast %149 : vector<8xf32> to vector<8x1xf32>
    %151 = arith.truncf %148 : vector<8x8xf32> to vector<8x8xbf16>
    %cst_93 = arith.constant dense<0.000000e+00> : vector<8x4xf32>
    %152 = tpu.matmul %151, %142, %cst_93 {dimension_numbers = #tpu.dot_dimension_numbers<[1], [0], [0], [1], [0, 0, 1, 1], [], []>} : vector<8x8xbf16>, vector<8x4xbf16>, vector<8x4xf32> -> vector<8x4xf32>
    %153 = tpu.reciprocal %150 : vector<8x1xf32> -> vector<8x1xf32>
    %154 = vector.broadcast %153 : vector<8x1xf32> to vector<8x4xf32>
    %155 = arith.mulf %152, %154 : vector<8x4xf32>
    %156 = arith.truncf %155 : vector<8x4xf32> to vector<8x4xbf16>
    %c0_94 = arith.constant 0 : index
    %c28_95 = arith.constant 28 : index
    %157 = vector.load %arg12[%c0_94, %c28_95] : memref<8x32xbf16, #tpu.memory_space<vmem>>, vector<8x4xbf16>
    tpu.vector_store %arg12[%c0_94, %c28_95], %156 {strides = array<i32>} : memref<8x32xbf16, #tpu.memory_space<vmem>>, vector<8x4xbf16>,
    %c0_96 = arith.constant 0 : index
    %c0_97 = arith.constant 0 : index
    %158 = vector.load %arg12[%c0_96, %c0_97] : memref<8x32xbf16, #tpu.memory_space<vmem>>, vector<8x32xbf16>
    %c0_98 = arith.constant 0 : index
    %c0_99 = arith.constant 0 : index
    %159 = vector.load %arg6[%c0_98, %c0_99] : memref<32x32xbf16, #tpu.memory_space<vmem>>, vector<32x32xbf16>
    %cst_100 = arith.constant dense<0.000000e+00> : vector<8x32xf32>
    %160 = tpu.matmul %158, %159, %cst_100 {dimension_numbers = #tpu.dot_dimension_numbers<[1], [0], [0], [1], [0, 0, 1, 1], [], []>} : vector<8x32xbf16>, vector<32x32xbf16>, vector<8x32xf32> -> vector<8x32xf32>
    %c0_101 = arith.constant 0 : index
    %c0_102 = arith.constant 0 : index
    %161 = vector.load %arg7[%c0_101, %c0_102] : memref<1x32xf32, #tpu.memory_space<vmem>>, vector<1x32xf32>
    %162 = vector.broadcast %161 : vector<1x32xf32> to vector<8x32xf32>
    %163 = arith.addf %160, %162 : vector<8x32xf32>
    %c0_103 = arith.constant 0 : index
    %c0_104 = arith.constant 0 : index
    %c0_105 = arith.constant 0 : index
    %164 = vector.load %arg8[%c0_103, %c0_104, %c0_105] : memref<1x8x32xf32, #tpu.memory_space<vmem>>, vector<1x8x32xf32>
    %165 = vector.shape_cast %164 : vector<1x8x32xf32> to vector<8x32xf32>
    %166 = vector.shape_cast %163 : vector<8x32xf32> to vector<1x8x32xf32>
    tpu.vector_store %arg8[%c0_103, %c0_104, %c0_105], %166 {strides = array<i32>} : memref<1x8x32xf32, #tpu.memory_space<vmem>>, vector<1x8x32xf32>,
    return
  }
  func.func @transform_0(%arg0: i32, %arg1: i32) -> (i32, i32, i32) {
    %c0_i32 = arith.constant 0 : i32
    %c0_i32_0 = arith.constant 0 : i32
    %c0_i32_1 = arith.constant 0 : i32
    return %arg0, %c0_i32, %c0_i32_0 : i32, i32, i32
  }
  func.func @transform_1(%arg0: i32, %arg1: i32) -> (i32, i32) {
    %c0_i32 = arith.constant 0 : i32
    %c0_i32_0 = arith.constant 0 : i32
    %c0_i32_1 = arith.constant 0 : i32
    return %c0_i32, %c0_i32_0 : i32, i32
  }
  func.func @transform_2(%arg0: i32, %arg1: i32) -> (i32, i32) {
    %c0_i32 = arith.constant 0 : i32
    %c0_i32_0 = arith.constant 0 : i32
    %c0_i32_1 = arith.constant 0 : i32
    return %c0_i32, %c0_i32_0 : i32, i32
  }
  func.func @transform_3(%arg0: i32, %arg1: i32) -> (i32, i32) {
    %c0_i32 = arith.constant 0 : i32
    %c0_i32_0 = arith.constant 0 : i32
    %c0_i32_1 = arith.constant 0 : i32
    return %c0_i32, %c0_i32_0 : i32, i32
  }
  func.func @transform_4(%arg0: i32, %arg1: i32) -> (i32, i32) {
    %c0_i32 = arith.constant 0 : i32
    %c0_i32_0 = arith.constant 0 : i32
    %c0_i32_1 = arith.constant 0 : i32
    return %c0_i32, %c0_i32_0 : i32, i32
  }
  func.func @transform_5(%arg0: i32, %arg1: i32) -> (i32, i32) {
    %c0_i32 = arith.constant 0 : i32
    %c0_i32_0 = arith.constant 0 : i32
    %c0_i32_1 = arith.constant 0 : i32
    return %c0_i32, %c0_i32_0 : i32, i32
  }
  func.func @transform_6(%arg0: i32, %arg1: i32) -> (i32, i32, i32) {
    %c0_i32 = arith.constant 0 : i32
    %c0_i32_0 = arith.constant 0 : i32
    return %arg0, %arg1, %c0_i32 : i32, i32, i32
  }
}

</mosaic_0001>

<llo_original>
// kernel: tpu_custom_call.1
$region0: #{tpu_custom_call.1}
  #allocation0 [shape = 'u32[]', space=smem, size = 0x4, offset = 0x4, fixed_abs, tag = 'smem constant byte address 0x4 - core index']
  #allocation1 [shape = 'u32[144,128]{1,0:T(1,128)}', space=vmem, size = 0x12000, scoped, tag = 'internal scratch']
  #allocation2 [shape = 'bf16[8,32]{1,0:T(8,128)(2,1)}', space=vmem, size = 0x800, scoped, tag = 'scratch operand']
  #allocation3 [shape = 'bf16[8,32]{1,0:T(8,128)(2,1)}', space=vmem, size = 0x800, scoped, tag = 'scratch operand']
  #allocation4 [shape = 'bf16[8,32]{1,0:T(8,128)(2,1)}', space=vmem, size = 0x800, scoped, tag = 'scratch operand']
  #allocation5 [shape = 'bf16[8,32]{1,0:T(8,128)(2,1)}', space=vmem, size = 0x800, scoped, tag = 'scratch operand']
  %s0 = inlined_call_operand.hbm [shape: bf16[2,8,32], index: 0, kind: input, shape index: {}]
  %s1 = inlined_call_operand.hbm [shape: bf16[32,32], index: 1, kind: input, shape index: {}]
  %s2 = inlined_call_operand.hbm [shape: bf16[32,32], index: 2, kind: input, shape index: {}]
  %s3 = inlined_call_operand.hbm [shape: bf16[32,32], index: 3, kind: input, shape index: {}]
  %s4 = inlined_call_operand.hbm [shape: bf16[32,32], index: 4, kind: input, shape index: {}]
  %s5 = inlined_call_operand.vmem [shape: f32[1,32], index: 5, kind: input, shape index: {}]
  %s6 = inlined_call_operand.hbm [shape: f32[2,8,32], index: 6, kind: output, shape index: {}]
  %s7 = sld [smem:[#allocation0]]
  $region81: #{tpu_custom_call.1} parent=0
    _
  %s9 = ssub.s32 1, %s7
  %s10 = scalar_select 0, %s9, %s7
  $region1: #{tpu_custom_call.1} parent=0
    #allocation6 [shape = 'u8[4096]{0}', space=vmem, size = 0x1000, scoped, tag = 'input window, operand 0']
    #allocation7 [shape = 's32[2]{0}', space=sflag, size = 0x8, scoped, tag = 'scoped memory for tpu_custom_call.1']
    #allocation8 [shape = 's32[2]{0}', space=sflag, size = 0x8, scoped, tag = 'scoped memory for tpu_custom_call.1']
    #allocation9 [shape = 'u8[8192]{0}', space=vmem, size = 0x2000, scoped, tag = 'input window, operand 1, single buffered']
    #allocation10 [shape = 's32[1]{0}', space=sflag, size = 0x4, scoped, tag = 'scoped memory for tpu_custom_call.1']
    #allocation11 [shape = 'u8[8192]{0}', space=vmem, size = 0x2000, scoped, tag = 'input window, operand 2, single buffered']
    #allocation12 [shape = 'u8[8192]{0}', space=vmem, size = 0x2000, scoped, tag = 'input window, operand 3, single buffered']
    #allocation13 [shape = 's32[1]{0}', space=sflag, size = 0x4, scoped, tag = 'scoped memory for tpu_custom_call.1']
    #allocation14 [shape = 'u8[8192]{0}', space=vmem, size = 0x2000, scoped, tag = 'input window, operand 4, single buffered']
    #allocation15 [shape = 'u8[8192]{0}', space=vmem, size = 0x2000, scoped, tag = 'output window, operand 0']
    %11 = vsyncpa [#allocation7], 0
    %s12 = scalar_lea.sflag [#allocation7], 1
    %13 = vsyncpa %s12, 0
    %14 = vsyncpa [#allocation10], 0
    %15 = vsyncpa [#allocation13], 0
    %16 = vsyncpa [#allocation8], 0
    %s17 = scalar_lea.sflag [#allocation8], 1
    %18 = vsyncpa %s17, 0
    loop: start=0, step=1, limit=4
    $region2: #{tpu_custom_call.1} parent=1 // loop_pre_header
      _
    $region3: #{tpu_custom_call.1} parent=1 // loop_header
      %s20 = sphi 0, %s24
      %p21 = scmp.ge.s32.totalorder %s20, 4
      %s27 = sphi 0, %s39
      %s28 = sphi 0, %s35
      %s29 = sphi 0, %s27
      %s30 = sphi 0, %s28
      %s31 = sphi 0, %s29
      %s32 = sphi 0, %s30
      %s42 = sphi 0, %s44
      %s45 = sphi 0, %s42
      %s46 = sphi 0, %s45
      %s62 = sphi 0, %s46
      %s66 = sphi 0, %s66
      %s68 = sphi 0, %s66
      %s69 = sphi 0, %s68
      %s83 = sphi 0, %s69
      %s87 = sphi 0, %s87
      %s89 = sphi 0, %s87
      %s90 = sphi 0, %s89
      %s104 = sphi 0, %s90
      %s108 = sphi 0, %s108
      %s110 = sphi 0, %s108
      %s111 = sphi 0, %s110
      %s125 = sphi 0, %s111
      %s129 = sphi 0, %s129
      %s131 = sphi 0, %s129
      %s132 = sphi 0, %s131
      %s146 = sphi 0, %s132
      %s150 = sphi 0, %s150
      %s152 = sphi 0, %s150
      %s153 = sphi 0, %s152
      %s167 = sphi 0, %s153
      %s175 = sphi 0, %s177
      %s178 = sphi 0, %s175
      %s179 = sphi 0, %s178
      %s195 = sphi 0, %s179
    $region4: #{tpu_custom_call.1} parent=1 // loop_header_branch
      %23 = sbr.rel (%p21) target = $region8
    $region5: #{tpu_custom_call.1} parent=1 // loop_body
      %s25 = ssub.s32 %s20, 1
      %s26 = ssub.s32 %s20, 2
      %s33 = sadd.s32 1, %s28
      %p34 = scmp.ge.s32.totalorder %s33, 1
      %s35 = scalar_select %p34, 0, %s33
      %s36 = sadd.s32 1, %s27
      %s37 = scalar_select %p34, %s36, %s27
      %p38 = scmp.ge.s32.totalorder %s37, 2
      %s39 = scalar_select %p38, 0, %s37
      %s40 = ssub.s32 %s27, %s39
      %p41 = scmp.eq.s32.totalorder %s40, 0
      %s43 = sadd.s32 %s42, 1
      %s44 = scalar_select %p41, %s42, %s43
      %p47 = pneg %p41
      %p48 = scmp.eq.s32.totalorder %s20, 1
      %p49 = por %p47, %p48
      %p50 = scmp.ne.s32.totalorder %s42, %s45
      %p51 = scmp.eq.s32.totalorder %s20, 0
      %p52 = por %p50, %p51
      %p53 = scmp.ne.s32.totalorder %s42, %s45
      %p54 = scmp.eq.s32.totalorder %s25, 1
      %p55 = por %p53, %p54
      %p56 = scmp.ne.s32.totalorder %s45, %s46
      %p57 = scmp.eq.s32.totalorder %s25, 0
      %p58 = por %p56, %p57
      %p59 = scmp.ne.s32.totalorder %s45, %s46
      %p60 = scmp.eq.s32.totalorder %s26, 1
      %p61 = por %p59, %p60
      %p63 = scmp.ne.s32.totalorder %s46, %s62
      %p64 = scmp.eq.s32.totalorder %s26, 0
      %p65 = por %p63, %p64
      %s67 = sadd.s32 %s66, 1
      %p70 = scmp.eq.s32.totalorder %s20, 1
      %p71 = scmp.ne.s32.totalorder %s66, %s68
      %p72 = scmp.eq.s32.totalorder %s20, 0
      %p73 = por %p71, %p72
      %p74 = scmp.ne.s32.totalorder %s66, %s68
      %p75 = scmp.eq.s32.totalorder %s25, 1
      %p76 = por %p74, %p75
      %p77 = scmp.ne.s32.totalorder %s68, %s69
      %p78 = scmp.eq.s32.totalorder %s25, 0
      %p79 = por %p77, %p78
      %p80 = scmp.ne.s32.totalorder %s68, %s69
      %p81 = scmp.eq.s32.totalorder %s26, 1
      %p82 = por %p80, %p81
      %p84 = scmp.ne.s32.totalorder %s69, %s83
      %p85 = scmp.eq.s32.totalorder %s26, 0
      %p86 = por %p84, %p85
      %s88 = sadd.s32 %s87, 1
      %p91 = scmp.eq.s32.totalorder %s20, 1
      %p92 = scmp.ne.s32.totalorder %s87, %s89
      %p93 = scmp.eq.s32.totalorder %s20, 0
      %p94 = por %p92, %p93
      %p95 = scmp.ne.s32.totalorder %s87, %s89
      %p96 = scmp.eq.s32.totalorder %s25, 1
      %p97 = por %p95, %p96
      %p98 = scmp.ne.s32.totalorder %s89, %s90
      %p99 = scmp.eq.s32.totalorder %s25, 0
      %p100 = por %p98, %p99
      %p101 = scmp.ne.s32.totalorder %s89, %s90
      %p102 = scmp.eq.s32.totalorder %s26, 1
      %p103 = por %p101, %p102
      %p105 = scmp.ne.s32.totalorder %s90, %s104
      %p106 = scmp.eq.s32.totalorder %s26, 0
      %p107 = por %p105, %p106
      %s109 = sadd.s32 %s108, 1
      %p112 = scmp.eq.s32.totalorder %s20, 1
      %p113 = scmp.ne.s32.totalorder %s108, %s110
      %p114 = scmp.eq.s32.totalorder %s20, 0
      %p115 = por %p113, %p114
      %p116 = scmp.ne.s32.totalorder %s108, %s110
      %p117 = scmp.eq.s32.totalorder %s25, 1
      %p118 = por %p116, %p117
      %p119 = scmp.ne.s32.totalorder %s110, %s111
      %p120 = scmp.eq.s32.totalorder %s25, 0
      %p121 = por %p119, %p120
      %p122 = scmp.ne.s32.totalorder %s110, %s111
      %p123 = scmp.eq.s32.totalorder %s26, 1
      %p124 = por %p122, %p123
      %p126 = scmp.ne.s32.totalorder %s111, %s125
      %p127 = scmp.eq.s32.totalorder %s26, 0
      %p128 = por %p126, %p127
      %s130 = sadd.s32 %s129, 1
      %p133 = scmp.eq.s32.totalorder %s20, 1
      %p134 = scmp.ne.s32.totalorder %s129, %s131
      %p135 = scmp.eq.s32.totalorder %s20, 0
      %p136 = por %p134, %p135
      %p137 = scmp.ne.s32.totalorder %s129, %s131
      %p138 = scmp.eq.s32.totalorder %s25, 1
      %p139 = por %p137, %p138
      %p140 = scmp.ne.s32.totalorder %s131, %s132
      %p141 = scmp.eq.s32.totalorder %s25, 0
      %p142 = por %p140, %p141
      %p143 = scmp.ne.s32.totalorder %s131, %s132
      %p144 = scmp.eq.s32.totalorder %s26, 1
      %p145 = por %p143, %p144
      %p147 = scmp.ne.s32.totalorder %s132, %s146
      %p148 = scmp.eq.s32.totalorder %s26, 0
      %p149 = por %p147, %p148
      %s151 = sadd.s32 %s150, 1
      %p154 = scmp.eq.s32.totalorder %s20, 1
      %p155 = scmp.ne.s32.totalorder %s150, %s152
      %p156 = scmp.eq.s32.totalorder %s20, 0
      %p157 = por %p155, %p156
      %p158 = scmp.ne.s32.totalorder %s150, %s152
      %p159 = scmp.eq.s32.totalorder %s25, 1
      %p160 = por %p158, %p159
      %p161 = scmp.ne.s32.totalorder %s152, %s153
      %p162 = scmp.eq.s32.totalorder %s25, 0
      %p163 = por %p161, %p162
      %p164 = scmp.ne.s32.totalorder %s152, %s153
      %p165 = scmp.eq.s32.totalorder %s26, 1
      %p166 = por %p164, %p165
      %p168 = scmp.ne.s32.totalorder %s153, %s167
      %p169 = scmp.eq.s32.totalorder %s26, 0
      %p170 = por %p168, %p169
      %s171 = ssub.s32 %s27, %s39
      %s172 = ssub.s32 %s28, %s35
      %s173 = sor.u32 %s171, %s172
      %p174 = scmp.eq.s32.totalorder %s173, 0
      %s176 = sadd.s32 %s175, 1
      %s177 = scalar_select %p174, %s175, %s176
      %p180 = pneg %p174
      %p181 = scmp.eq.s32.totalorder %s20, 1
      %p182 = por %p180, %p181
      %p183 = scmp.ne.s32.totalorder %s175, %s178
      %p184 = scmp.eq.s32.totalorder %s20, 0
      %p185 = por %p183, %p184
      %p186 = scmp.ne.s32.totalorder %s175, %s178
      %p187 = scmp.eq.s32.totalorder %s25, 1
      %p188 = por %p186, %p187
      %p189 = scmp.ne.s32.totalorder %s178, %s179
      %p190 = scmp.eq.s32.totalorder %s25, 0
      %p191 = por %p189, %p190
      %p192 = scmp.ne.s32.totalorder %s178, %s179
      %p193 = scmp.eq.s32.totalorder %s26, 1
      %p194 = por %p192, %p193
      %p196 = scmp.ne.s32.totalorder %s179, %s195
      %p197 = scmp.eq.s32.totalorder %s26, 0
      %p198 = por %p196, %p197
      %p199 = scmp.le.s32.totalorder 1, %s20
      %p200 = scmp.lt.s32.totalorder %s20, 3
      %p201 = pnand %p199, %p200
      %p202 = pneg %p201
      // Predicated region
      $region9: #{tpu_custom_call.1} parent=5 // pred_check
        _
      $region10: #{tpu_custom_call.1} parent=5 // pred_check_branch
        %204 = sbr.rel (%p201) target = $region12
      $region11: #{tpu_custom_call.1} parent=5 // pred_region
        %s205 = ssub.s32 %s20, 1
        // Predicated region
        $region13: #{tpu_custom_call.1} parent=11 // pred_check
          %p206 = pneg %p79
        $region14: #{tpu_custom_call.1} parent=11 // pred_check_branch
          %208 = sbr.rel (%p206) target = $region16
        $region15: #{tpu_custom_call.1} parent=11 // pred_region
          %s210 = ssub.s32 256, 256
          %211 = vsyncadd [#allocation10], %s210
          %s212 = sshll.u32 [#allocation9], 4
          %s213 = int_to_ptr.vmem [resolvable:$true] %s212
          %218 = dma.hbm_to_vmem [thread:$0]  %s1, 256, %s213, [#allocation10], 64, 64, 4
        $region16: #{tpu_custom_call.1} parent=11 // pred_fallthru
          _
        // Predicated region
        $region17: #{tpu_custom_call.1} parent=11 // pred_check
          %p219 = pneg %p100
        $region18: #{tpu_custom_call.1} parent=11 // pred_check_branch
          %221 = sbr.rel (%p219) target = $region20
        $region19: #{tpu_custom_call.1} parent=11 // pred_region
          %s223 = ssub.s32 256, 256
          %224 = vsyncadd [#allocation10], %s223
          %s225 = sshll.u32 [#allocation11], 4
          %s226 = int_to_ptr.vmem [resolvable:$true] %s225
          %231 = dma.hbm_to_vmem [thread:$0]  %s2, 256, %s226, [#allocation10], 64, 64, 4
        $region20: #{tpu_custom_call.1} parent=11 // pred_fallthru
          _
        // Predicated region
        $region21: #{tpu_custom_call.1} parent=11 // pred_check
          %p232 = pneg %p121
        $region22: #{tpu_custom_call.1} parent=11 // pred_check_branch
          %234 = sbr.rel (%p232) target = $region24
        $region23: #{tpu_custom_call.1} parent=11 // pred_region
          %s236 = ssub.s32 256, 256
          %237 = vsyncadd [#allocation13], %s236
          %s238 = sshll.u32 [#allocation12], 4
          %s239 = int_to_ptr.vmem [resolvable:$true] %s238
          %244 = dma.hbm_to_vmem [thread:$0]  %s3, 256, %s239, [#allocation13], 64, 64, 4
        $region24: #{tpu_custom_call.1} parent=11 // pred_fallthru
          _
        // Predicated region
        $region25: #{tpu_custom_call.1} parent=11 // pred_check
          %p245 = pneg %p142
        $region26: #{tpu_custom_call.1} parent=11 // pred_check_branch
          %247 = sbr.rel (%p245) target = $region28
        $region27: #{tpu_custom_call.1} parent=11 // pred_region
          %s249 = ssub.s32 256, 256
          %250 = vsyncadd [#allocation13], %s249
          %s251 = sshll.u32 [#allocation14], 4
          %s252 = int_to_ptr.vmem [resolvable:$true] %s251
          %257 = dma.hbm_to_vmem [thread:$0]  %s4, 256, %s252, [#allocation13], 64, 64, 4
        $region28: #{tpu_custom_call.1} parent=11 // pred_fallthru
          _
        // Predicated region
        $region29: #{tpu_custom_call.1} parent=11 // pred_check
          %p258 = pneg %p163
        $region30: #{tpu_custom_call.1} parent=11 // pred_check_branch
          %260 = sbr.rel (%p258) target = $region32
        $region31: #{tpu_custom_call.1} parent=11 // pred_region
          _
        $region32: #{tpu_custom_call.1} parent=11 // pred_fallthru
          _
      $region12: #{tpu_custom_call.1} parent=5 // pred_fallthru
        _
      %p261 = scmp.lt.s32.totalorder %s20, 2
      // Predicated region
      $region33: #{tpu_custom_call.1} parent=5 // pred_check
        %p262 = pneg %p261
      $region34: #{tpu_custom_call.1} parent=5 // pred_check_branch
        %264 = sbr.rel (%p262) target = $region36
      $region35: #{tpu_custom_call.1} parent=5 // pred_region
        // Predicated region
        $region37: #{tpu_custom_call.1} parent=35 // pred_check
          %p265 = pneg %p52
        $region38: #{tpu_custom_call.1} parent=35 // pred_check_branch
          %267 = sbr.rel (%p265) target = $region40
        $region39: #{tpu_custom_call.1} parent=35 // pred_region
          %s268 = sand.u32 %s42, 1
          %s269 = scalar_lea.sflag [#allocation7], %s268
          %s270 = sand.u32 %s42, 1
          %s271 = smul.addr %s270, 4
          %s272 = scalar_lea.vmem [#allocation6], %s271
          %s274 = ssub.s32 64, 64
          %275 = vsyncadd %s269, %s274
          %s276 = smul.addr %s27, 64
          %s277 = scalar_lea.hbm %s0, %s276
          %s279 = sshll.u32 %s272, 4
          %s280 = int_to_ptr.vmem [resolvable:$true] %s279
          %282 = dma.hbm_to_vmem [thread:$0]  %s277, 64, %s280, %s269
        $region40: #{tpu_custom_call.1} parent=35 // pred_fallthru
          _
      $region36: #{tpu_custom_call.1} parent=5 // pred_fallthru
        _
      %p283 = scmp.le.s32.totalorder 1, %s20
      %p284 = scmp.lt.s32.totalorder %s20, 3
      %p285 = pnand %p283, %p284
      %p286 = pneg %p285
      // Predicated region
      $region41: #{tpu_custom_call.1} parent=5 // pred_check
        _
      $region42: #{tpu_custom_call.1} parent=5 // pred_check_branch
        %288 = sbr.rel (%p285) target = $region44
      $region43: #{tpu_custom_call.1} parent=5 // pred_region
        %s289 = ssub.s32 %s20, 1
        %s290 = sand.u32 %s45, 1
        %s291 = scalar_lea.sflag [#allocation7], %s290
        %s292 = sand.u32 %s45, 1
        %s293 = smul.addr %s292, 4
        %s294 = scalar_lea.vmem [#allocation6], %s293
        // Predicated region
        $region45: #{tpu_custom_call.1} parent=43 // pred_check
          %p295 = pneg %p58
        $region46: #{tpu_custom_call.1} parent=43 // pred_check_branch
          %297 = sbr.rel (%p295) target = $region48
        $region47: #{tpu_custom_call.1} parent=43 // pred_region
          %298 = dma.done %s291, 64
        $region48: #{tpu_custom_call.1} parent=43 // pred_fallthru
          _
        // Predicated region
        $region49: #{tpu_custom_call.1} parent=43 // pred_check
          %p299 = pneg %p79
        $region50: #{tpu_custom_call.1} parent=43 // pred_check_branch
          %301 = sbr.rel (%p299) target = $region52
        $region51: #{tpu_custom_call.1} parent=43 // pred_region
          %302 = dma.done [#allocation10], 256
        $region52: #{tpu_custom_call.1} parent=43 // pred_fallthru
          _
        // Predicated region
        $region53: #{tpu_custom_call.1} parent=43 // pred_check
          %p303 = pneg %p100
        $region54: #{tpu_custom_call.1} parent=43 // pred_check_branch
          %305 = sbr.rel (%p303) target = $region56
        $region55: #{tpu_custom_call.1} parent=43 // pred_region
          %306 = dma.done [#allocation10], 256
        $region56: #{tpu_custom_call.1} parent=43 // pred_fallthru
          _
        // Predicated region
        $region57: #{tpu_custom_call.1} parent=43 // pred_check
          %p307 = pneg %p121
        $region58: #{tpu_custom_call.1} parent=43 // pred_check_branch
          %309 = sbr.rel (%p307) target = $region60
        $region59: #{tpu_custom_call.1} parent=43 // pred_region
          %310 = dma.done [#allocation13], 256
        $region60: #{tpu_custom_call.1} parent=43 // pred_fallthru
          _
        // Predicated region
        $region61: #{tpu_custom_call.1} parent=43 // pred_check
          %p311 = pneg %p142
        $region62: #{tpu_custom_call.1} parent=43 // pred_check_branch
          %313 = sbr.rel (%p311) target = $region64
        $region63: #{tpu_custom_call.1} parent=43 // pred_region
          %314 = dma.done [#allocation13], 256
        $region64: #{tpu_custom_call.1} parent=43 // pred_fallthru
          _
        %s315 = sand.u32 %s45, 1
        %s316 = scalar_lea.sflag [#allocation7], %s315
        %s317 = sand.u32 %s45, 1
        %s318 = smul.addr %s317, 4
        %s319 = scalar_lea.vmem [#allocation6], %s318
        %p320 = pneg %p58
        %p321 = pneg %p55
        %p322 = pneg %p79
        %p323 = pneg %p76
        %p324 = pneg %p100
        %p325 = pneg %p97
        %p326 = pneg %p121
        %p327 = pneg %p118
        %p328 = pneg %p142
        %p329 = pneg %p139
        %p330 = pneg %p163
        %p331 = pneg %p160
        %p332 = pneg %p191
        %p333 = pneg %p188
        %s334 = sand.u32 %s178, 1
        %s335 = scalar_lea.sflag [#allocation8], %s334
        %s336 = sand.u32 %s178, 1
        %s337 = smul.addr %s336, 8
        %s338 = scalar_lea.vmem [#allocation15], %s337
        %p340 = scmp.eq.s32.totalorder %s30, 0
        // Predicated region
        $region65: #{tpu_custom_call.1} parent=43 // pred_check
          %p341 = pneg %p340
        $region66: #{tpu_custom_call.1} parent=43 // pred_check_branch
          %343 = sbr.rel (%p341) target = $region68
        $region67: #{tpu_custom_call.1} parent=43 // pred_region
          %v344 = vld [vmem:[%s294] sm:$0xf]
          %v345 = vld [vmem:[#allocation11] sm:$0xf]
          %v346 = vld [vmem:[#allocation11 + $0x4] sm:$0xf]
          %v347 = vld [vmem:[#allocation11 + $0x8] sm:$0xf]
          %v348 = vld [vmem:[#allocation11 + $0xc] sm:$0xf]
          %v353 = vunpack.c.l.b16 %v345
          %v354 = vunpack.c.l.b16 %v346
          %v355 = vunpack.c.l.b16 %v347
          %v356 = vunpack.c.l.b16 %v348
          %v357 = vpack.c.b16 %v354, %v353
          %v358 = vpack.c.b16 %v356, %v355
          %vm361 = vcmask 261120
          %v363 = vsel %vm361, %v344, 0
          %365 = vmatprep.subr.bf16.mxu0 0
          %366 = vmatpush1.bf16.msra.mxu0 %v357
          %367 = vmatprep.subr.bf16.mxu0 0
          %368 = vmatpush1.bf16.msra.mxu0 %v358
          %369 = vmatprep.subr.bf16.mxu0 0
          %370 = vmatpush1.bf16.msra.mxu0 0
          %371 = vmatprep.subr.bf16.mxu0 0
          %372 = vmatpush1.bf16.msra.mxu0 0
          %373 = vmatprep.subr.bf16.mxu0 0
          %374 = vmatpush1.bf16.msra.mxu0 0
          %375 = vmatprep.subr.bf16.mxu0 0
          %376 = vmatpush1.bf16.msra.mxu0 0
          %377 = vmatprep.subr.bf16.mxu0 0
          %378 = vmatpush1.bf16.msra.mxu0 0
          %379 = vmatprep.subr.bf16.mxu0 0
          %380 = vmatpush1.bf16.msra.mxu0 0
          %381 = vmatprep.subr.bf16.mxu0 0
          %382 = vmatpush1.bf16.msra.mxu0 0
          %383 = vmatprep.subr.bf16.mxu0 0
          %384 = vmatpush1.bf16.msra.mxu0 0
          %385 = vmatprep.subr.bf16.mxu0 0
          %386 = vmatpush1.bf16.msra.mxu0 0
          %387 = vmatprep.subr.bf16.mxu0 0
          %388 = vmatpush1.bf16.msra.mxu0 0
          %389 = vmatprep.subr.bf16.mxu0 0
          %390 = vmatpush1.bf16.msra.mxu0 0
          %391 = vmatprep.subr.bf16.mxu0 0
          %392 = vmatpush1.bf16.msra.mxu0 0
          %393 = vmatprep.subr.bf16.mxu0 0
          %394 = vmatpush1.bf16.msra.mxu0 0
          %395 = vmatprep.subr.bf16.mxu0 0
          %396 = vmatpush1.bf16.msra.mxu0 0
          %397 = vmatprep.mubr.bf16.mxu0 0
          %398 = vmatmul.mubr.bf16.gmra.mrb[0].mxu0 %v363
          %v399 = vpop.f32.mrb[0].mxu0
          %v400 = vadd.f32 0.0, %v399
          %v401 = vpop.f32.mrb[0].mxu0
          %v402 = vpop.f32.mrb[0].mxu0
          %v403 = vpop.f32.mrb[0].mxu0
          %404 = vdwg.mxu0
          %v405 = vpack.c.bf16 %v400, %v400
          %vm406 = vcmask 257024
          %407 = vst.msk [vmem:[#allocation2] sm:$0xf] %vm406, %v405
          %v408 = vld [vmem:[#allocation12] sm:$0xf]
          %v409 = vld [vmem:[#allocation12 + $0x4] sm:$0xf]
          %v410 = vld [vmem:[#allocation12 + $0x8] sm:$0xf]
          %v411 = vld [vmem:[#allocation12 + $0xc] sm:$0xf]
          %v416 = vunpack.c.l.b16 %v408
          %v417 = vunpack.c.l.b16 %v409
          %v418 = vunpack.c.l.b16 %v410
          %v419 = vunpack.c.l.b16 %v411
          %v420 = vpack.c.b16 %v417, %v416
          %v421 = vpack.c.b16 %v419, %v418
          %424 = vmatprep.subr.bf16.mxu0 0
          %425 = vmatpush1.bf16.msra.mxu0 %v420
          %426 = vmatprep.subr.bf16.mxu0 0
          %427 = vmatpush1.bf16.msra.mxu0 %v421
          %428 = vmatprep.subr.bf16.mxu0 0
          %429 = vmatpush1.bf16.msra.mxu0 0
          %430 = vmatprep.subr.bf16.mxu0 0
          %431 = vmatpush1.bf16.msra.mxu0 0
          %432 = vmatprep.subr.bf16.mxu0 0
          %433 = vmatpush1.bf16.msra.mxu0 0
          %434 = vmatprep.subr.bf16.mxu0 0
          %435 = vmatpush1.bf16.msra.mxu0 0
          %436 = vmatprep.subr.bf16.mxu0 0
          %437 = vmatpush1.bf16.msra.mxu0 0
          %438 = vmatprep.subr.bf16.mxu0 0
          %439 = vmatpush1.bf16.msra.mxu0 0
          %440 = vmatprep.subr.bf16.mxu0 0
          %441 = vmatpush1.bf16.msra.mxu0 0
          %442 = vmatprep.subr.bf16.mxu0 0
          %443 = vmatpush1.bf16.msra.mxu0 0
          %444 = vmatprep.subr.bf16.mxu0 0
          %445 = vmatpush1.bf16.msra.mxu0 0
          %446 = vmatprep.subr.bf16.mxu0 0
          %447 = vmatpush1.bf16.msra.mxu0 0
          %448 = vmatprep.subr.bf16.mxu0 0
          %449 = vmatpush1.bf16.msra.mxu0 0
          %450 = vmatprep.subr.bf16.mxu0 0
          %451 = vmatpush1.bf16.msra.mxu0 0
          %452 = vmatprep.subr.bf16.mxu0 0
          %453 = vmatpush1.bf16.msra.mxu0 0
          %454 = vmatprep.subr.bf16.mxu0 0
          %455 = vmatpush1.bf16.msra.mxu0 0
          %456 = vmatprep.mubr.bf16.mxu0 0
          %457 = vmatmul.mubr.bf16.gmra.mrb[0].mxu0 %v363
          %v458 = vpop.f32.mrb[0].mxu0
          %v459 = vadd.f32 0.0, %v458
          %v460 = vpop.f32.mrb[0].mxu0
          %v461 = vpop.f32.mrb[0].mxu0
          %v462 = vpop.f32.mrb[0].mxu0
          %463 = vdwg.mxu0
          %v464 = vpack.c.bf16 %v459, %v459
          %465 = vst.msk [vmem:[#allocation3] sm:$0xf] %vm406, %v464
        $region68: #{tpu_custom_call.1} parent=43 // pred_fallthru
          _
        %s466 = smul.u32 %s30, 8
        %s467 = sshra.s32 %s466, 3
        %s468 = sand.u32 %s466, 7
        %s469 = smul.addr %s467, 4
        %s470 = scalar_lea.vmem %s294, %s469 [#allocation6]
        %v471 = vld [vmem:[%s470] sm:$0xf]
        %v472 = vld [vmem:[#allocation9] sm:$0xf]
        %v473 = vld [vmem:[#allocation9 + $0x4] sm:$0xf]
        %v474 = vld [vmem:[#allocation9 + $0x8] sm:$0xf]
        %v475 = vld [vmem:[#allocation9 + $0xc] sm:$0xf]
        %v480 = vunpack.c.l.b16 %v472
        %v481 = vunpack.c.l.b16 %v473
        %v482 = vunpack.c.l.b16 %v474
        %v483 = vunpack.c.l.b16 %v475
        %v484 = vpack.c.b16 %v481, %v480
        %v485 = vpack.c.b16 %v483, %v482
        %vm488 = vcmask 261120
        %v490 = vsel %vm488, %v471, 0
        %492 = vmatprep.subr.bf16.mxu0 0
        %493 = vmatpush1.bf16.msra.mxu0 %v484
        %494 = vmatprep.subr.bf16.mxu0 0
        %495 = vmatpush1.bf16.msra.mxu0 %v485
        %496 = vmatprep.subr.bf16.mxu0 0
        %497 = vmatpush1.bf16.msra.mxu0 0
        %498 = vmatprep.subr.bf16.mxu0 0
        %499 = vmatpush1.bf16.msra.mxu0 0
        %500 = vmatprep.subr.bf16.mxu0 0
        %501 = vmatpush1.bf16.msra.mxu0 0
        %502 = vmatprep.subr.bf16.mxu0 0
        %503 = vmatpush1.bf16.msra.mxu0 0
        %504 = vmatprep.subr.bf16.mxu0 0
        %505 = vmatpush1.bf16.msra.mxu0 0
        %506 = vmatprep.subr.bf16.mxu0 0
        %507 = vmatpush1.bf16.msra.mxu0 0
        %508 = vmatprep.subr.bf16.mxu0 0
        %509 = vmatpush1.bf16.msra.mxu0 0
        %510 = vmatprep.subr.bf16.mxu0 0
        %511 = vmatpush1.bf16.msra.mxu0 0
        %512 = vmatprep.subr.bf16.mxu0 0
        %513 = vmatpush1.bf16.msra.mxu0 0
        %514 = vmatprep.subr.bf16.mxu0 0
        %515 = vmatpush1.bf16.msra.mxu0 0
        %516 = vmatprep.subr.bf16.mxu0 0
        %517 = vmatpush1.bf16.msra.mxu0 0
        %518 = vmatprep.subr.bf16.mxu0 0
        %519 = vmatpush1.bf16.msra.mxu0 0
        %520 = vmatprep.subr.bf16.mxu0 0
        %521 = vmatpush1.bf16.msra.mxu0 0
        %522 = vmatprep.subr.bf16.mxu0 0
        %523 = vmatpush1.bf16.msra.mxu0 0
        %524 = vmatprep.mubr.bf16.mxu0 0
        %525 = vmatmul.mubr.bf16.gmra.mrb[0].mxu0 %v490
        %v526 = vpop.f32.mrb[0].mxu0
        %v527 = vadd.f32 0.0, %v526
        %v528 = vpop.f32.mrb[0].mxu0
        %v529 = vpop.f32.mrb[0].mxu0
        %v530 = vpop.f32.mrb[0].mxu0
        %531 = vdwg.mxu0
        %v532 = vmul.f32 %v527, 0.5
        %v533 = vpack.c.bf16 %v532, %v532
        %vm534 = vcmask 257024
        %535 = vst.msk [vmem:[#allocation4] sm:$0xf] %vm534, %v533
        %v536 = vld [vmem:[#allocation4] sm:$0xf]
        %v537 = vld [vmem:[#allocation2] sm:$0xf]
        %v538 = vld [vmem:[#allocation3] sm:$0xf]
        %vm539 = vcmask 31744
        %v541 = vsel %vm539, %v536, 0
        %v544 = vsel %vm539, %v537, 0
        %546 = vmatprep.subr.bf16.mxu0 0
        %547 = vmatpush1.bf16.xpose.msra.mxu0 %v544
        %548 = vmatprep.subr.bf16.mxu0 0
        %549 = vmatpush1.bf16.xpose.msra.mxu0 0
        %550 = vmatprep.subr.bf16.mxu0 0
        %551 = vmatpush1.bf16.xpose.msra.mxu0 0
        %552 = vmatprep.subr.bf16.mxu0 0
        %553 = vmatpush1.bf16.xpose.msra.mxu0 0
        %554 = vmatprep.subr.bf16.mxu0 0
        %555 = vmatpush1.bf16.xpose.msra.mxu0 0
        %556 = vmatprep.subr.bf16.mxu0 0
        %557 = vmatpush1.bf16.xpose.msra.mxu0 0
        %558 = vmatprep.subr.bf16.mxu0 0
        %559 = vmatpush1.bf16.xpose.msra.mxu0 0
        %560 = vmatprep.subr.bf16.mxu0 0
        %561 = vmatpush1.bf16.xpose.msra.mxu0 0
        %562 = vmatprep.subr.bf16.mxu0 0
        %563 = vmatpush1.bf16.xpose.msra.mxu0 0
        %564 = vmatprep.subr.bf16.mxu0 0
        %565 = vmatpush1.bf16.xpose.msra.mxu0 0
        %566 = vmatprep.subr.bf16.mxu0 0
        %567 = vmatpush1.bf16.xpose.msra.mxu0 0
        %568 = vmatprep.subr.bf16.mxu0 0
        %569 = vmatpush1.bf16.xpose.msra.mxu0 0
        %570 = vmatprep.subr.bf16.mxu0 0
        %571 = vmatpush1.bf16.xpose.msra.mxu0 0
        %572 = vmatprep.subr.bf16.mxu0 0
        %573 = vmatpush1.bf16.xpose.msra.mxu0 0
        %574 = vmatprep.subr.bf16.mxu0 0
        %575 = vmatpush1.bf16.xpose.msra.mxu0 0
        %576 = vmatprep.subr.bf16.mxu0 0
        %577 = vmatpush1.bf16.xpose.msra.mxu0 0
        %578 = vmatprep.mubr.bf16.mxu0 0
        %579 = vmatmul.mubr.bf16.gmra.mrb[0].mxu0 %v541
        %v580 = vpop.f32.mrb[0].mxu0
        %v581 = vadd.f32 0.0, %v580
        %v582 = vpop.f32.mrb[0].mxu0
        %v583 = vpop.f32.mrb[0].mxu0
        %v584 = vpop.f32.mrb[0].mxu0
        %585 = vdwg.mxu0
        %vm586 = vcmask 64512
        %v587 = vsel %vm586, %v581, -inf
        %588 = vmax.xlane.f32.xlu0 %v587
        %v589 = vpop.xlane.xlu0 %588
        %v590 = vsub.f32 %v581, %v589
        %v591 = vmul.f32 %v590, 1.442695
        %v592 = vpow.pop %v591
        %v593 = vsel %vm586, %v592, 0.0
        %594 = vadd.xlane.f32.xlu0 %v593
        %v595 = vpop.xlane.xlu0 %594
        %v596 = vpack.c.bf16 %v592, %v592
        %v598 = vsel %vm586, %v596, 0
        %vm600 = vcmask 1043456
        %v602 = vsel %vm600, %v538, 0
        %604 = vmatprep.subr.bf16.mxu0 0
        %605 = vmatpush1.bf16.msra.mxu0 %v602
        %606 = vmatprep.subr.bf16.mxu0 0
        %607 = vmatpush1.bf16.msra.mxu0 0
        %608 = vmatprep.subr.bf16.mxu0 0
        %609 = vmatpush1.bf16.msra.mxu0 0
        %610 = vmatprep.subr.bf16.mxu0 0
        %611 = vmatpush1.bf16.msra.mxu0 0
        %612 = vmatprep.subr.bf16.mxu0 0
        %613 = vmatpush1.bf16.msra.mxu0 0
        %614 = vmatprep.subr.bf16.mxu0 0
        %615 = vmatpush1.bf16.msra.mxu0 0
        %616 = vmatprep.subr.bf16.mxu0 0
        %617 = vmatpush1.bf16.msra.mxu0 0
        %618 = vmatprep.subr.bf16.mxu0 0
        %619 = vmatpush1.bf16.msra.mxu0 0
        %620 = vmatprep.subr.bf16.mxu0 0
        %621 = vmatpush1.bf16.msra.mxu0 0
        %622 = vmatprep.subr.bf16.mxu0 0
        %623 = vmatpush1.bf16.msra.mxu0 0
        %624 = vmatprep.subr.bf16.mxu0 0
        %625 = vmatpush1.bf16.msra.mxu0 0
        %626 = vmatprep.subr.bf16.mxu0 0
        %627 = vmatpush1.bf16.msra.mxu0 0
        %628 = vmatprep.subr.bf16.mxu0 0
        %629 = vmatpush1.bf16.msra.mxu0 0
        %630 = vmatprep.subr.bf16.mxu0 0
        %631 = vmatpush1.bf16.msra.mxu0 0
        %632 = vmatprep.subr.bf16.mxu0 0
        %633 = vmatpush1.bf16.msra.mxu0 0
        %634 = vmatprep.subr.bf16.mxu0 0
        %635 = vmatpush1.bf16.msra.mxu0 0
        %636 = vmatprep.mubr.bf16.mxu0 0
        %637 = vmatmul.mubr.bf16.gmra.mrb[0].mxu0 %v598
        %v638 = vpop.f32.mrb[0].mxu0
        %v639 = vadd.f32 0.0, %v638
        %v640 = vpop.f32.mrb[0].mxu0
        %v641 = vpop.f32.mrb[0].mxu0
        %v642 = vpop.f32.mrb[0].mxu0
        %643 = vdwg.mxu0
        %v644 = vrcp.pop %v595
        %v645 = vmul.f32 %v639, %v644
        %v646 = vpack.c.bf16 %v645, %v645
        %vm647 = vcmask 27648
        %648 = vst.msk [vmem:[#allocation5] sm:$0xf] %vm647, %v646
        %v649 = vld [vmem:[#allocation4] sm:$0xf]
        %v650 = vld [vmem:[#allocation2] sm:$0xf]
        %v651 = vld [vmem:[#allocation3] sm:$0xf]
        %v653 = vunpack.c.l.b16 %v649
        %v654 = vpack.c.b16 %v653, %v653
        %655 = vrot.lane.b32.xlu0 %v654, 124
        %v656 = vpop.permute.xlu0 %655
        %v658 = vunpack.c.l.b16 %v650
        %v659 = vpack.c.b16 %v658, %v658
        %660 = vrot.lane.b32.xlu0 %v659, 124
        %v661 = vpop.permute.xlu0 %660
        %v663 = vsel %vm539, %v656, 0
        %v666 = vsel %vm539, %v661, 0
        %668 = vmatprep.subr.bf16.mxu0 0
        %669 = vmatpush1.bf16.xpose.msra.mxu0 %v666
        %670 = vmatprep.subr.bf16.mxu0 0
        %671 = vmatpush1.bf16.xpose.msra.mxu0 0
        %672 = vmatprep.subr.bf16.mxu0 0
        %673 = vmatpush1.bf16.xpose.msra.mxu0 0
        %674 = vmatprep.subr.bf16.mxu0 0
        %675 = vmatpush1.bf16.xpose.msra.mxu0 0
        %676 = vmatprep.subr.bf16.mxu0 0
        %677 = vmatpush1.bf16.xpose.msra.mxu0 0
        %678 = vmatprep.subr.bf16.mxu0 0
        %679 = vmatpush1.bf16.xpose.msra.mxu0 0
        %680 = vmatprep.subr.bf16.mxu0 0
        %681 = vmatpush1.bf16.xpose.msra.mxu0 0
        %682 = vmatprep.subr.bf16.mxu0 0
        %683 = vmatpush1.bf16.xpose.msra.mxu0 0
        %684 = vmatprep.subr.bf16.mxu0 0
        %685 = vmatpush1.bf16.xpose.msra.mxu0 0
        %686 = vmatprep.subr.bf16.mxu0 0
        %687 = vmatpush1.bf16.xpose.msra.mxu0 0
        %688 = vmatprep.subr.bf16.mxu0 0
        %689 = vmatpush1.bf16.xpose.msra.mxu0 0
        %690 = vmatprep.subr.bf16.mxu0 0
        %691 = vmatpush1.bf16.xpose.msra.mxu0 0
        %692 = vmatprep.subr.bf16.mxu0 0
        %693 = vmatpush1.bf16.xpose.msra.mxu0 0
        %694 = vmatprep.subr.bf16.mxu0 0
        %695 = vmatpush1.bf16.xpose.msra.mxu0 0
        %696 = vmatprep.subr.bf16.mxu0 0
        %697 = vmatpush1.bf16.xpose.msra.mxu0 0
        %698 = vmatprep.subr.bf16.mxu0 0
        %699 = vmatpush1.bf16.xpose.msra.mxu0 0
        %700 = vmatprep.mubr.bf16.mxu0 0
        %701 = vmatmul.mubr.bf16.gmra.mrb[0].mxu0 %v663
        %v702 = vpop.f32.mrb[0].mxu0
        %v703 = vadd.f32 0.0, %v702
        %v704 = vpop.f32.mrb[0].mxu0
        %v705 = vpop.f32.mrb[0].mxu0
        %v706 = vpop.f32.mrb[0].mxu0
        %707 = vdwg.mxu0
        %v708 = vsel %vm586, %v703, -inf
        %709 = vmax.xlane.f32.xlu0 %v708
        %v710 = vpop.xlane.xlu0 %709
        %v711 = vsub.f32 %v703, %v710
        %v712 = vmul.f32 %v711, 1.442695
        %v713 = vpow.pop %v712
        %v714 = vsel %vm586, %v713, 0.0
        %715 = vadd.xlane.f32.xlu0 %v714
        %v716 = vpop.xlane.xlu0 %715
        %v717 = vpack.c.bf16 %v713, %v713
        %v719 = vunpack.c.l.b16 %v651
        %v720 = vpack.c.b16 %v719, %v719
        %721 = vrot.lane.b32.xlu0 %v720, 124
        %v722 = vpop.permute.xlu0 %721
        %v724 = vsel %vm586, %v717, 0
        %v727 = vsel %vm600, %v722, 0
        %729 = vmatprep.subr.bf16.mxu0 0
        %730 = vmatpush1.bf16.msra.mxu0 %v727
        %731 = vmatprep.subr.bf16.mxu0 0
        %732 = vmatpush1.bf16.msra.mxu0 0
        %733 = vmatprep.subr.bf16.mxu0 0
        %734 = vmatpush1.bf16.msra.mxu0 0
        %735 = vmatprep.subr.bf16.mxu0 0
        %736 = vmatpush1.bf16.msra.mxu0 0
        %737 = vmatprep.subr.bf16.mxu0 0
        %738 = vmatpush1.bf16.msra.mxu0 0
        %739 = vmatprep.subr.bf16.mxu0 0
        %740 = vmatpush1.bf16.msra.mxu0 0
        %741 = vmatprep.subr.bf16.mxu0 0
        %742 = vmatpush1.bf16.msra.mxu0 0
        %743 = vmatprep.subr.bf16.mxu0 0
        %744 = vmatpush1.bf16.msra.mxu0 0
        %745 = vmatprep.subr.bf16.mxu0 0
        %746 = vmatpush1.bf16.msra.mxu0 0
        %747 = vmatprep.subr.bf16.mxu0 0
        %748 = vmatpush1.bf16.msra.mxu0 0
        %749 = vmatprep.subr.bf16.mxu0 0
        %750 = vmatpush1.bf16.msra.mxu0 0
        %751 = vmatprep.subr.bf16.mxu0 0
        %752 = vmatpush1.bf16.msra.mxu0 0
        %753 = vmatprep.subr.bf16.mxu0 0
        %754 = vmatpush1.bf16.msra.mxu0 0
        %755 = vmatprep.subr.bf16.mxu0 0
        %756 = vmatpush1.bf16.msra.mxu0 0
        %757 = vmatprep.subr.bf16.mxu0 0
        %758 = vmatpush1.bf16.msra.mxu0 0
        %759 = vmatprep.subr.bf16.mxu0 0
        %760 = vmatpush1.bf16.msra.mxu0 0
        %761 = vmatprep.mubr.bf16.mxu0 0
        %762 = vmatmul.mubr.bf16.gmra.mrb[0].mxu0 %v724
        %v763 = vpop.f32.mrb[0].mxu0
        %v764 = vadd.f32 0.0, %v763
        %v765 = vpop.f32.mrb[0].mxu0
        %v766 = vpop.f32.mrb[0].mxu0
        %v767 = vpop.f32.mrb[0].mxu0
        %768 = vdwg.mxu0
        %v769 = vrcp.pop %v716
        %v770 = vmul.f32 %v764, %v769
        %v771 = vpack.c.bf16 %v770, %v770
        %v773 = vunpack.c.l.b16 %v771
        %v774 = vpack.c.b16 %v773, %v773
        %775 = vrot.lane.b32.xlu0 %v774, 4
        %v776 = vpop.permute.xlu0 %775
        %vm778 = vcmask 60448
        %779 = vst.msk [vmem:[#allocation5] sm:$0xf] %vm778, %v776
        %v780 = vld [vmem:[#allocation4] sm:$0xf]
        %v781 = vld [vmem:[#allocation2] sm:$0xf]
        %v782 = vld [vmem:[#allocation3] sm:$0xf]
        %v784 = vunpack.c.l.b16 %v780
        %v785 = vpack.c.b16 %v784, %v784
        %786 = vrot.lane.b32.xlu0 %v785, 120
        %v787 = vpop.permute.xlu0 %786
        %v789 = vunpack.c.l.b16 %v781
        %v790 = vpack.c.b16 %v789, %v789
        %791 = vrot.lane.b32.xlu0 %v790, 120
        %v792 = vpop.permute.xlu0 %791
        %v794 = vsel %vm539, %v787, 0
        %v797 = vsel %vm539, %v792, 0
        %799 = vmatprep.subr.bf16.mxu0 0
        %800 = vmatpush1.bf16.xpose.msra.mxu0 %v797
        %801 = vmatprep.subr.bf16.mxu0 0
        %802 = vmatpush1.bf16.xpose.msra.mxu0 0
        %803 = vmatprep.subr.bf16.mxu0 0
        %804 = vmatpush1.bf16.xpose.msra.mxu0 0
        %805 = vmatprep.subr.bf16.mxu0 0
        %806 = vmatpush1.bf16.xpose.msra.mxu0 0
        %807 = vmatprep.subr.bf16.mxu0 0
        %808 = vmatpush1.bf16.xpose.msra.mxu0 0
        %809 = vmatprep.subr.bf16.mxu0 0
        %810 = vmatpush1.bf16.xpose.msra.mxu0 0
        %811 = vmatprep.subr.bf16.mxu0 0
        %812 = vmatpush1.bf16.xpose.msra.mxu0 0
        %813 = vmatprep.subr.bf16.mxu0 0
        %814 = vmatpush1.bf16.xpose.msra.mxu0 0
        %815 = vmatprep.subr.bf16.mxu0 0
        %816 = vmatpush1.bf16.xpose.msra.mxu0 0
        %817 = vmatprep.subr.bf16.mxu0 0
        %818 = vmatpush1.bf16.xpose.msra.mxu0 0
        %819 = vmatprep.subr.bf16.mxu0 0
        %820 = vmatpush1.bf16.xpose.msra.mxu0 0
        %821 = vmatprep.subr.bf16.mxu0 0
        %822 = vmatpush1.bf16.xpose.msra.mxu0 0
        %823 = vmatprep.subr.bf16.mxu0 0
        %824 = vmatpush1.bf16.xpose.msra.mxu0 0
        %825 = vmatprep.subr.bf16.mxu0 0
        %826 = vmatpush1.bf16.xpose.msra.mxu0 0
        %827 = vmatprep.subr.bf16.mxu0 0
        %828 = vmatpush1.bf16.xpose.msra.mxu0 0
        %829 = vmatprep.subr.bf16.mxu0 0
        %830 = vmatpush1.bf16.xpose.msra.mxu0 0
        %831 = vmatprep.mubr.bf16.mxu0 0
        %832 = vmatmul.mubr.bf16.gmra.mrb[0].mxu0 %v794
        %v833 = vpop.f32.mrb[0].mxu0
        %v834 = vadd.f32 0.0, %v833
        %v835 = vpop.f32.mrb[0].mxu0
        %v836 = vpop.f32.mrb[0].mxu0
        %v837 = vpop.f32.mrb[0].mxu0
        %838 = vdwg.mxu0
        %v839 = vsel %vm586, %v834, -inf
        %840 = vmax.xlane.f32.xlu0 %v839
        %v841 = vpop.xlane.xlu0 %840
        %v842 = vsub.f32 %v834, %v841
        %v843 = vmul.f32 %v842, 1.442695
        %v844 = vpow.pop %v843
        %v845 = vsel %vm586, %v844, 0.0
        %846 = vadd.xlane.f32.xlu0 %v845
        %v847 = vpop.xlane.xlu0 %846
        %v848 = vpack.c.bf16 %v844, %v844
        %v850 = vunpack.c.l.b16 %v782
        %v851 = vpack.c.b16 %v850, %v850
        %852 = vrot.lane.b32.xlu0 %v851, 120
        %v853 = vpop.permute.xlu0 %852
        %v855 = vsel %vm586, %v848, 0
        %v858 = vsel %vm600, %v853, 0
        %860 = vmatprep.subr.bf16.mxu0 0
        %861 = vmatpush1.bf16.msra.mxu0 %v858
        %862 = vmatprep.subr.bf16.mxu0 0
        %863 = vmatpush1.bf16.msra.mxu0 0
        %864 = vmatprep.subr.bf16.mxu0 0
        %865 = vmatpush1.bf16.msra.mxu0 0
        %866 = vmatprep.subr.bf16.mxu0 0
        %867 = vmatpush1.bf16.msra.mxu0 0
        %868 = vmatprep.subr.bf16.mxu0 0
        %869 = vmatpush1.bf16.msra.mxu0 0
        %870 = vmatprep.subr.bf16.mxu0 0
        %871 = vmatpush1.bf16.msra.mxu0 0
        %872 = vmatprep.subr.bf16.mxu0 0
        %873 = vmatpush1.bf16.msra.mxu0 0
        %874 = vmatprep.subr.bf16.mxu0 0
        %875 = vmatpush1.bf16.msra.mxu0 0
        %876 = vmatprep.subr.bf16.mxu0 0
        %877 = vmatpush1.bf16.msra.mxu0 0
        %878 = vmatprep.subr.bf16.mxu0 0
        %879 = vmatpush1.bf16.msra.mxu0 0
        %880 = vmatprep.subr.bf16.mxu0 0
        %881 = vmatpush1.bf16.msra.mxu0 0
        %882 = vmatprep.subr.bf16.mxu0 0
        %883 = vmatpush1.bf16.msra.mxu0 0
        %884 = vmatprep.subr.bf16.mxu0 0
        %885 = vmatpush1.bf16.msra.mxu0 0
        %886 = vmatprep.subr.bf16.mxu0 0
        %887 = vmatpush1.bf16.msra.mxu0 0
        %888 = vmatprep.subr.bf16.mxu0 0
        %889 = vmatpush1.bf16.msra.mxu0 0
        %890 = vmatprep.subr.bf16.mxu0 0
        %891 = vmatpush1.bf16.msra.mxu0 0
        %892 = vmatprep.mubr.bf16.mxu0 0
        %893 = vmatmul.mubr.bf16.gmra.mrb[0].mxu0 %v855
        %v894 = vpop.f32.mrb[0].mxu0
        %v895 = vadd.f32 0.0, %v894
        %v896 = vpop.f32.mrb[0].mxu0
        %v897 = vpop.f32.mrb[0].mxu0
        %v898 = vpop.f32.mrb[0].mxu0
        %899 = vdwg.mxu0
        %v900 = vrcp.pop %v847
        %v901 = vmul.f32 %v895, %v900
        %v902 = vpack.c.bf16 %v901, %v901
        %v904 = vunpack.c.l.b16 %v902
        %v905 = vpack.c.b16 %v904, %v904
        %906 = vrot.lane.b32.xlu0 %v905, 8
        %v907 = vpop.permute.xlu0 %906
        %vm909 = vcmask 93248
        %910 = vst.msk [vmem:[#allocation5] sm:$0xf] %vm909, %v907
        %v911 = vld [vmem:[#allocation4] sm:$0xf]
        %v912 = vld [vmem:[#allocation2] sm:$0xf]
        %v913 = vld [vmem:[#allocation3] sm:$0xf]
        %v915 = vunpack.c.l.b16 %v911
        %v916 = vpack.c.b16 %v915, %v915
        %917 = vrot.lane.b32.xlu0 %v916, 116
        %v918 = vpop.permute.xlu0 %917
        %v920 = vunpack.c.l.b16 %v912
        %v921 = vpack.c.b16 %v920, %v920
        %922 = vrot.lane.b32.xlu0 %v921, 116
        %v923 = vpop.permute.xlu0 %922
        %v925 = vsel %vm539, %v918, 0
        %v928 = vsel %vm539, %v923, 0
        %930 = vmatprep.subr.bf16.mxu0 0
        %931 = vmatpush1.bf16.xpose.msra.mxu0 %v928
        %932 = vmatprep.subr.bf16.mxu0 0
        %933 = vmatpush1.bf16.xpose.msra.mxu0 0
        %934 = vmatprep.subr.bf16.mxu0 0
        %935 = vmatpush1.bf16.xpose.msra.mxu0 0
        %936 = vmatprep.subr.bf16.mxu0 0
        %937 = vmatpush1.bf16.xpose.msra.mxu0 0
        %938 = vmatprep.subr.bf16.mxu0 0
        %939 = vmatpush1.bf16.xpose.msra.mxu0 0
        %940 = vmatprep.subr.bf16.mxu0 0
        %941 = vmatpush1.bf16.xpose.msra.mxu0 0
        %942 = vmatprep.subr.bf16.mxu0 0
        %943 = vmatpush1.bf16.xpose.msra.mxu0 0
        %944 = vmatprep.subr.bf16.mxu0 0
        %945 = vmatpush1.bf16.xpose.msra.mxu0 0
        %946 = vmatprep.subr.bf16.mxu0 0
        %947 = vmatpush1.bf16.xpose.msra.mxu0 0
        %948 = vmatprep.subr.bf16.mxu0 0
        %949 = vmatpush1.bf16.xpose.msra.mxu0 0
        %950 = vmatprep.subr.bf16.mxu0 0
        %951 = vmatpush1.bf16.xpose.msra.mxu0 0
        %952 = vmatprep.subr.bf16.mxu0 0
        %953 = vmatpush1.bf16.xpose.msra.mxu0 0
        %954 = vmatprep.subr.bf16.mxu0 0
        %955 = vmatpush1.bf16.xpose.msra.mxu0 0
        %956 = vmatprep.subr.bf16.mxu0 0
        %957 = vmatpush1.bf16.xpose.msra.mxu0 0
        %958 = vmatprep.subr.bf16.mxu0 0
        %959 = vmatpush1.bf16.xpose.msra.mxu0 0
        %960 = vmatprep.subr.bf16.mxu0 0
        %961 = vmatpush1.bf16.xpose.msra.mxu0 0
        %962 = vmatprep.mubr.bf16.mxu0 0
        %963 = vmatmul.mubr.bf16.gmra.mrb[0].mxu0 %v925
        %v964 = vpop.f32.mrb[0].mxu0
        %v965 = vadd.f32 0.0, %v964
        %v966 = vpop.f32.mrb[0].mxu0
        %v967 = vpop.f32.mrb[0].mxu0
        %v968 = vpop.f32.mrb[0].mxu0
        %969 = vdwg.mxu0
        %v970 = vsel %vm586, %v965, -inf
        %971 = vmax.xlane.f32.xlu0 %v970
        %v972 = vpop.xlane.xlu0 %971
        %v973 = vsub.f32 %v965, %v972
        %v974 = vmul.f32 %v973, 1.442695
        %v975 = vpow.pop %v974
        %v976 = vsel %vm586, %v975, 0.0
        %977 = vadd.xlane.f32.xlu0 %v976
        %v978 = vpop.xlane.xlu0 %977
        %v979 = vpack.c.bf16 %v975, %v975
        %v981 = vunpack.c.l.b16 %v913
        %v982 = vpack.c.b16 %v981, %v981
        %983 = vrot.lane.b32.xlu0 %v982, 116
        %v984 = vpop.permute.xlu0 %983
        %v986 = vsel %vm586, %v979, 0
        %v989 = vsel %vm600, %v984, 0
        %991 = vmatprep.subr.bf16.mxu0 0
        %992 = vmatpush1.bf16.msra.mxu0 %v989
        %993 = vmatprep.subr.bf16.mxu0 0
        %994 = vmatpush1.bf16.msra.mxu0 0
        %995 = vmatprep.subr.bf16.mxu0 0
        %996 = vmatpush1.bf16.msra.mxu0 0
        %997 = vmatprep.subr.bf16.mxu0 0
        %998 = vmatpush1.bf16.msra.mxu0 0
        %999 = vmatprep.subr.bf16.mxu0 0
        %1000 = vmatpush1.bf16.msra.mxu0 0
        %1001 = vmatprep.subr.bf16.mxu0 0
        %1002 = vmatpush1.bf16.msra.mxu0 0
        %1003 = vmatprep.subr.bf16.mxu0 0
        %1004 = vmatpush1.bf16.msra.mxu0 0
        %1005 = vmatprep.subr.bf16.mxu0 0
        %1006 = vmatpush1.bf16.msra.mxu0 0
        %1007 = vmatprep.subr.bf16.mxu0 0
        %1008 = vmatpush1.bf16.msra.mxu0 0
        %1009 = vmatprep.subr.bf16.mxu0 0
        %1010 = vmatpush1.bf16.msra.mxu0 0
        %1011 = vmatprep.subr.bf16.mxu0 0
        %1012 = vmatpush1.bf16.msra.mxu0 0
        %1013 = vmatprep.subr.bf16.mxu0 0
        %1014 = vmatpush1.bf16.msra.mxu0 0
        %1015 = vmatprep.subr.bf16.mxu0 0
        %1016 = vmatpush1.bf16.msra.mxu0 0
        %1017 = vmatprep.subr.bf16.mxu0 0
        %1018 = vmatpush1.bf16.msra.mxu0 0
        %1019 = vmatprep.subr.bf16.mxu0 0
        %1020 = vmatpush1.bf16.msra.mxu0 0
        %1021 = vmatprep.subr.bf16.mxu0 0
        %1022 = vmatpush1.bf16.msra.mxu0 0
        %1023 = vmatprep.mubr.bf16.mxu0 0
        %1024 = vmatmul.mubr.bf16.gmra.mrb[0].mxu0 %v986
        %v1025 = vpop.f32.mrb[0].mxu0
        %v1026 = vadd.f32 0.0, %v1025
        %v1027 = vpop.f32.mrb[0].mxu0
        %v1028 = vpop.f32.mrb[0].mxu0
        %v1029 = vpop.f32.mrb[0].mxu0
        %1030 = vdwg.mxu0
        %v1031 = vrcp.pop %v978
        %v1032 = vmul.f32 %v1026, %v1031
        %v1033 = vpack.c.bf16 %v1032, %v1032
        %v1035 = vunpack.c.l.b16 %v1033
        %v1036 = vpack.c.b16 %v1035, %v1035
        %1037 = vrot.lane.b32.xlu0 %v1036, 12
        %v1038 = vpop.permute.xlu0 %1037
        %vm1040 = vcmask 126048
        %1041 = vst.msk [vmem:[#allocation5] sm:$0xf] %vm1040, %v1038
        %v1042 = vld [vmem:[#allocation4] sm:$0xf]
        %v1043 = vld [vmem:[#allocation2] sm:$0xf]
        %v1044 = vld [vmem:[#allocation3] sm:$0xf]
        %v1046 = vunpack.c.l.b16 %v1042
        %v1047 = vpack.c.b16 %v1046, %v1046
        %1048 = vrot.lane.b32.xlu0 %v1047, 112
        %v1049 = vpop.permute.xlu0 %1048
        %v1051 = vunpack.c.l.b16 %v1043
        %v1052 = vpack.c.b16 %v1051, %v1051
        %1053 = vrot.lane.b32.xlu0 %v1052, 112
        %v1054 = vpop.permute.xlu0 %1053
        %v1056 = vsel %vm539, %v1049, 0
        %v1059 = vsel %vm539, %v1054, 0
        %1061 = vmatprep.subr.bf16.mxu0 0
        %1062 = vmatpush1.bf16.xpose.msra.mxu0 %v1059
        %1063 = vmatprep.subr.bf16.mxu0 0
        %1064 = vmatpush1.bf16.xpose.msra.mxu0 0
        %1065 = vmatprep.subr.bf16.mxu0 0
        %1066 = vmatpush1.bf16.xpose.msra.mxu0 0
        %1067 = vmatprep.subr.bf16.mxu0 0
        %1068 = vmatpush1.bf16.xpose.msra.mxu0 0
        %1069 = vmatprep.subr.bf16.mxu0 0
        %1070 = vmatpush1.bf16.xpose.msra.mxu0 0
        %1071 = vmatprep.subr.bf16.mxu0 0
        %1072 = vmatpush1.bf16.xpose.msra.mxu0 0
        %1073 = vmatprep.subr.bf16.mxu0 0
        %1074 = vmatpush1.bf16.xpose.msra.mxu0 0
        %1075 = vmatprep.subr.bf16.mxu0 0
        %1076 = vmatpush1.bf16.xpose.msra.mxu0 0
        %1077 = vmatprep.subr.bf16.mxu0 0
        %1078 = vmatpush1.bf16.xpose.msra.mxu0 0
        %1079 = vmatprep.subr.bf16.mxu0 0
        %1080 = vmatpush1.bf16.xpose.msra.mxu0 0
        %1081 = vmatprep.subr.bf16.mxu0 0
        %1082 = vmatpush1.bf16.xpose.msra.mxu0 0
        %1083 = vmatprep.subr.bf16.mxu0 0
        %1084 = vmatpush1.bf16.xpose.msra.mxu0 0
        %1085 = vmatprep.subr.bf16.mxu0 0
        %1086 = vmatpush1.bf16.xpose.msra.mxu0 0
        %1087 = vmatprep.subr.bf16.mxu0 0
        %1088 = vmatpush1.bf16.xpose.msra.mxu0 0
        %1089 = vmatprep.subr.bf16.mxu0 0
        %1090 = vmatpush1.bf16.xpose.msra.mxu0 0
        %1091 = vmatprep.subr.bf16.mxu0 0
        %1092 = vmatpush1.bf16.xpose.msra.mxu0 0
        %1093 = vmatprep.mubr.bf16.mxu0 0
        %1094 = vmatmul.mubr.bf16.gmra.mrb[0].mxu0 %v1056
        %v1095 = vpop.f32.mrb[0].mxu0
        %v1096 = vadd.f32 0.0, %v1095
        %v1097 = vpop.f32.mrb[0].mxu0
        %v1098 = vpop.f32.mrb[0].mxu0
        %v1099 = vpop.f32.mrb[0].mxu0
        %1100 = vdwg.mxu0
        %v1101 = vsel %vm586, %v1096, -inf
        %1102 = vmax.xlane.f32.xlu0 %v1101
        %v1103 = vpop.xlane.xlu0 %1102
        %v1104 = vsub.f32 %v1096, %v1103
        %v1105 = vmul.f32 %v1104, 1.442695
        %v1106 = vpow.pop %v1105
        %v1107 = vsel %vm586, %v1106, 0.0
        %1108 = vadd.xlane.f32.xlu0 %v1107
        %v1109 = vpop.xlane.xlu0 %1108
        %v1110 = vpack.c.bf16 %v1106, %v1106
        %v1112 = vunpack.c.l.b16 %v1044
        %v1113 = vpack.c.b16 %v1112, %v1112
        %1114 = vrot.lane.b32.xlu0 %v1113, 112
        %v1115 = vpop.permute.xlu0 %1114
        %v1117 = vsel %vm586, %v1110, 0
        %v1120 = vsel %vm600, %v1115, 0
        %1122 = vmatprep.subr.bf16.mxu0 0
        %1123 = vmatpush1.bf16.msra.mxu0 %v1120
        %1124 = vmatprep.subr.bf16.mxu0 0
        %1125 = vmatpush1.bf16.msra.mxu0 0
        %1126 = vmatprep.subr.bf16.mxu0 0
        %1127 = vmatpush1.bf16.msra.mxu0 0
        %1128 = vmatprep.subr.bf16.mxu0 0
        %1129 = vmatpush1.bf16.msra.mxu0 0
        %1130 = vmatprep.subr.bf16.mxu0 0
        %1131 = vmatpush1.bf16.msra.mxu0 0
        %1132 = vmatprep.subr.bf16.mxu0 0
        %1133 = vmatpush1.bf16.msra.mxu0 0
        %1134 = vmatprep.subr.bf16.mxu0 0
        %1135 = vmatpush1.bf16.msra.mxu0 0
        %1136 = vmatprep.subr.bf16.mxu0 0
        %1137 = vmatpush1.bf16.msra.mxu0 0
        %1138 = vmatprep.subr.bf16.mxu0 0
        %1139 = vmatpush1.bf16.msra.mxu0 0
        %1140 = vmatprep.subr.bf16.mxu0 0
        %1141 = vmatpush1.bf16.msra.mxu0 0
        %1142 = vmatprep.subr.bf16.mxu0 0
        %1143 = vmatpush1.bf16.msra.mxu0 0
        %1144 = vmatprep.subr.bf16.mxu0 0
        %1145 = vmatpush1.bf16.msra.mxu0 0
        %1146 = vmatprep.subr.bf16.mxu0 0
        %1147 = vmatpush1.bf16.msra.mxu0 0
        %1148 = vmatprep.subr.bf16.mxu0 0
        %1149 = vmatpush1.bf16.msra.mxu0 0
        %1150 = vmatprep.subr.bf16.mxu0 0
        %1151 = vmatpush1.bf16.msra.mxu0 0
        %1152 = vmatprep.subr.bf16.mxu0 0
        %1153 = vmatpush1.bf16.msra.mxu0 0
        %1154 = vmatprep.mubr.bf16.mxu0 0
        %1155 = vmatmul.mubr.bf16.gmra.mrb[0].mxu0 %v1117
        %v1156 = vpop.f32.mrb[0].mxu0
        %v1157 = vadd.f32 0.0, %v1156
        %v1158 = vpop.f32.mrb[0].mxu0
        %v1159 = vpop.f32.mrb[0].mxu0
        %v1160 = vpop.f32.mrb[0].mxu0
        %1161 = vdwg.mxu0
        %v1162 = vrcp.pop %v1109
        %v1163 = vmul.f32 %v1157, %v1162
        %v1164 = vpack.c.bf16 %v1163, %v1163
        %v1166 = vunpack.c.l.b16 %v1164
        %v1167 = vpack.c.b16 %v1166, %v1166
        %1168 = vrot.lane.b32.xlu0 %v1167, 16
        %v1169 = vpop.permute.xlu0 %1168
        %vm1171 = vcmask 158848
        %1172 = vst.msk [vmem:[#allocation5] sm:$0xf] %vm1171, %v1169
        %v1173 = vld [vmem:[#allocation4] sm:$0xf]
        %v1174 = vld [vmem:[#allocation2] sm:$0xf]
        %v1175 = vld [vmem:[#allocation3] sm:$0xf]
        %v1177 = vunpack.c.l.b16 %v1173
        %v1178 = vpack.c.b16 %v1177, %v1177
        %1179 = vrot.lane.b32.xlu0 %v1178, 108
        %v1180 = vpop.permute.xlu0 %1179
        %v1182 = vunpack.c.l.b16 %v1174
        %v1183 = vpack.c.b16 %v1182, %v1182
        %1184 = vrot.lane.b32.xlu0 %v1183, 108
        %v1185 = vpop.permute.xlu0 %1184
        %v1187 = vsel %vm539, %v1180, 0
        %v1190 = vsel %vm539, %v1185, 0
        %1192 = vmatprep.subr.bf16.mxu0 0
        %1193 = vmatpush1.bf16.xpose.msra.mxu0 %v1190
        %1194 = vmatprep.subr.bf16.mxu0 0
        %1195 = vmatpush1.bf16.xpose.msra.mxu0 0
        %1196 = vmatprep.subr.bf16.mxu0 0
        %1197 = vmatpush1.bf16.xpose.msra.mxu0 0
        %1198 = vmatprep.subr.bf16.mxu0 0
        %1199 = vmatpush1.bf16.xpose.msra.mxu0 0
        %1200 = vmatprep.subr.bf16.mxu0 0
        %1201 = vmatpush1.bf16.xpose.msra.mxu0 0
        %1202 = vmatprep.subr.bf16.mxu0 0
        %1203 = vmatpush1.bf16.xpose.msra.mxu0 0
        %1204 = vmatprep.subr.bf16.mxu0 0
        %1205 = vmatpush1.bf16.xpose.msra.mxu0 0
        %1206 = vmatprep.subr.bf16.mxu0 0
        %1207 = vmatpush1.bf16.xpose.msra.mxu0 0
        %1208 = vmatprep.subr.bf16.mxu0 0
        %1209 = vmatpush1.bf16.xpose.msra.mxu0 0
        %1210 = vmatprep.subr.bf16.mxu0 0
        %1211 = vmatpush1.bf16.xpose.msra.mxu0 0
        %1212 = vmatprep.subr.bf16.mxu0 0
        %1213 = vmatpush1.bf16.xpose.msra.mxu0 0
        %1214 = vmatprep.subr.bf16.mxu0 0
        %1215 = vmatpush1.bf16.xpose.msra.mxu0 0
        %1216 = vmatprep.subr.bf16.mxu0 0
        %1217 = vmatpush1.bf16.xpose.msra.mxu0 0
        %1218 = vmatprep.subr.bf16.mxu0 0
        %1219 = vmatpush1.bf16.xpose.msra.mxu0 0
        %1220 = vmatprep.subr.bf16.mxu0 0
        %1221 = vmatpush1.bf16.xpose.msra.mxu0 0
        %1222 = vmatprep.subr.bf16.mxu0 0
        %1223 = vmatpush1.bf16.xpose.msra.mxu0 0
        %1224 = vmatprep.mubr.bf16.mxu0 0
        %1225 = vmatmul.mubr.bf16.gmra.mrb[0].mxu0 %v1187
        %v1226 = vpop.f32.mrb[0].mxu0
        %v1227 = vadd.f32 0.0, %v1226
        %v1228 = vpop.f32.mrb[0].mxu0
        %v1229 = vpop.f32.mrb[0].mxu0
        %v1230 = vpop.f32.mrb[0].mxu0
        %1231 = vdwg.mxu0
        %v1232 = vsel %vm586, %v1227, -inf
        %1233 = vmax.xlane.f32.xlu0 %v1232
        %v1234 = vpop.xlane.xlu0 %1233
        %v1235 = vsub.f32 %v1227, %v1234
        %v1236 = vmul.f32 %v1235, 1.442695
        %v1237 = vpow.pop %v1236
        %v1238 = vsel %vm586, %v1237, 0.0
        %1239 = vadd.xlane.f32.xlu0 %v1238
        %v1240 = vpop.xlane.xlu0 %1239
        %v1241 = vpack.c.bf16 %v1237, %v1237
        %v1243 = vunpack.c.l.b16 %v1175
        %v1244 = vpack.c.b16 %v1243, %v1243
        %1245 = vrot.lane.b32.xlu0 %v1244, 108
        %v1246 = vpop.permute.xlu0 %1245
        %v1248 = vsel %vm586, %v1241, 0
        %v1251 = vsel %vm600, %v1246, 0
        %1253 = vmatprep.subr.bf16.mxu0 0
        %1254 = vmatpush1.bf16.msra.mxu0 %v1251
        %1255 = vmatprep.subr.bf16.mxu0 0
        %1256 = vmatpush1.bf16.msra.mxu0 0
        %1257 = vmatprep.subr.bf16.mxu0 0
        %1258 = vmatpush1.bf16.msra.mxu0 0
        %1259 = vmatprep.subr.bf16.mxu0 0
        %1260 = vmatpush1.bf16.msra.mxu0 0
        %1261 = vmatprep.subr.bf16.mxu0 0
        %1262 = vmatpush1.bf16.msra.mxu0 0
        %1263 = vmatprep.subr.bf16.mxu0 0
        %1264 = vmatpush1.bf16.msra.mxu0 0
        %1265 = vmatprep.subr.bf16.mxu0 0
        %1266 = vmatpush1.bf16.msra.mxu0 0
        %1267 = vmatprep.subr.bf16.mxu0 0
        %1268 = vmatpush1.bf16.msra.mxu0 0
        %1269 = vmatprep.subr.bf16.mxu0 0
        %1270 = vmatpush1.bf16.msra.mxu0 0
        %1271 = vmatprep.subr.bf16.mxu0 0
        %1272 = vmatpush1.bf16.msra.mxu0 0
        %1273 = vmatprep.subr.bf16.mxu0 0
        %1274 = vmatpush1.bf16.msra.mxu0 0
        %1275 = vmatprep.subr.bf16.mxu0 0
        %1276 = vmatpush1.bf16.msra.mxu0 0
        %1277 = vmatprep.subr.bf16.mxu0 0
        %1278 = vmatpush1.bf16.msra.mxu0 0
        %1279 = vmatprep.subr.bf16.mxu0 0
        %1280 = vmatpush1.bf16.msra.mxu0 0
        %1281 = vmatprep.subr.bf16.mxu0 0
        %1282 = vmatpush1.bf16.msra.mxu0 0
        %1283 = vmatprep.subr.bf16.mxu0 0
        %1284 = vmatpush1.bf16.msra.mxu0 0
        %1285 = vmatprep.mubr.bf16.mxu0 0
        %1286 = vmatmul.mubr.bf16.gmra.mrb[0].mxu0 %v1248
        %v1287 = vpop.f32.mrb[0].mxu0
        %v1288 = vadd.f32 0.0, %v1287
        %v1289 = vpop.f32.mrb[0].mxu0
        %v1290 = vpop.f32.mrb[0].mxu0
        %v1291 = vpop.f32.mrb[0].mxu0
        %1292 = vdwg.mxu0
        %v1293 = vrcp.pop %v1240
        %v1294 = vmul.f32 %v1288, %v1293
        %v1295 = vpack.c.bf16 %v1294, %v1294
        %v1297 = vunpack.c.l.b16 %v1295
        %v1298 = vpack.c.b16 %v1297, %v1297
        %1299 = vrot.lane.b32.xlu0 %v1298, 20
        %v1300 = vpop.permute.xlu0 %1299
        %vm1302 = vcmask 191648
        %1303 = vst.msk [vmem:[#allocation5] sm:$0xf] %vm1302, %v1300
        %v1304 = vld [vmem:[#allocation4] sm:$0xf]
        %v1305 = vld [vmem:[#allocation2] sm:$0xf]
        %v1306 = vld [vmem:[#allocation3] sm:$0xf]
        %v1308 = vunpack.c.l.b16 %v1304
        %v1309 = vpack.c.b16 %v1308, %v1308
        %1310 = vrot.lane.b32.xlu0 %v1309, 104
        %v1311 = vpop.permute.xlu0 %1310
        %v1313 = vunpack.c.l.b16 %v1305
        %v1314 = vpack.c.b16 %v1313, %v1313
        %1315 = vrot.lane.b32.xlu0 %v1314, 104
        %v1316 = vpop.permute.xlu0 %1315
        %v1318 = vsel %vm539, %v1311, 0
        %v1321 = vsel %vm539, %v1316, 0
        %1323 = vmatprep.subr.bf16.mxu0 0
        %1324 = vmatpush1.bf16.xpose.msra.mxu0 %v1321
        %1325 = vmatprep.subr.bf16.mxu0 0
        %1326 = vmatpush1.bf16.xpose.msra.mxu0 0
        %1327 = vmatprep.subr.bf16.mxu0 0
        %1328 = vmatpush1.bf16.xpose.msra.mxu0 0
        %1329 = vmatprep.subr.bf16.mxu0 0
        %1330 = vmatpush1.bf16.xpose.msra.mxu0 0
        %1331 = vmatprep.subr.bf16.mxu0 0
        %1332 = vmatpush1.bf16.xpose.msra.mxu0 0
        %1333 = vmatprep.subr.bf16.mxu0 0
        %1334 = vmatpush1.bf16.xpose.msra.mxu0 0
        %1335 = vmatprep.subr.bf16.mxu0 0
        %1336 = vmatpush1.bf16.xpose.msra.mxu0 0
        %1337 = vmatprep.subr.bf16.mxu0 0
        %1338 = vmatpush1.bf16.xpose.msra.mxu0 0
        %1339 = vmatprep.subr.bf16.mxu0 0
        %1340 = vmatpush1.bf16.xpose.msra.mxu0 0
        %1341 = vmatprep.subr.bf16.mxu0 0
        %1342 = vmatpush1.bf16.xpose.msra.mxu0 0
        %1343 = vmatprep.subr.bf16.mxu0 0
        %1344 = vmatpush1.bf16.xpose.msra.mxu0 0
        %1345 = vmatprep.subr.bf16.mxu0 0
        %1346 = vmatpush1.bf16.xpose.msra.mxu0 0
        %1347 = vmatprep.subr.bf16.mxu0 0
        %1348 = vmatpush1.bf16.xpose.msra.mxu0 0
        %1349 = vmatprep.subr.bf16.mxu0 0
        %1350 = vmatpush1.bf16.xpose.msra.mxu0 0
        %1351 = vmatprep.subr.bf16.mxu0 0
        %1352 = vmatpush1.bf16.xpose.msra.mxu0 0
        %1353 = vmatprep.subr.bf16.mxu0 0
        %1354 = vmatpush1.bf16.xpose.msra.mxu0 0
        %1355 = vmatprep.mubr.bf16.mxu0 0
        %1356 = vmatmul.mubr.bf16.gmra.mrb[0].mxu0 %v1318
        %v1357 = vpop.f32.mrb[0].mxu0
        %v1358 = vadd.f32 0.0, %v1357
        %v1359 = vpop.f32.mrb[0].mxu0
        %v1360 = vpop.f32.mrb[0].mxu0
        %v1361 = vpop.f32.mrb[0].mxu0
        %1362 = vdwg.mxu0
        %v1363 = vsel %vm586, %v1358, -inf
        %1364 = vmax.xlane.f32.xlu0 %v1363
        %v1365 = vpop.xlane.xlu0 %1364
        %v1366 = vsub.f32 %v1358, %v1365
        %v1367 = vmul.f32 %v1366, 1.442695
        %v1368 = vpow.pop %v1367
        %v1369 = vsel %vm586, %v1368, 0.0
        %1370 = vadd.xlane.f32.xlu0 %v1369
        %v1371 = vpop.xlane.xlu0 %1370
        %v1372 = vpack.c.bf16 %v1368, %v1368
        %v1374 = vunpack.c.l.b16 %v1306
        %v1375 = vpack.c.b16 %v1374, %v1374
        %1376 = vrot.lane.b32.xlu0 %v1375, 104
        %v1377 = vpop.permute.xlu0 %1376
        %v1379 = vsel %vm586, %v1372, 0
        %v1382 = vsel %vm600, %v1377, 0
        %1384 = vmatprep.subr.bf16.mxu0 0
        %1385 = vmatpush1.bf16.msra.mxu0 %v1382
        %1386 = vmatprep.subr.bf16.mxu0 0
        %1387 = vmatpush1.bf16.msra.mxu0 0
        %1388 = vmatprep.subr.bf16.mxu0 0
        %1389 = vmatpush1.bf16.msra.mxu0 0
        %1390 = vmatprep.subr.bf16.mxu0 0
        %1391 = vmatpush1.bf16.msra.mxu0 0
        %1392 = vmatprep.subr.bf16.mxu0 0
        %1393 = vmatpush1.bf16.msra.mxu0 0
        %1394 = vmatprep.subr.bf16.mxu0 0
        %1395 = vmatpush1.bf16.msra.mxu0 0
        %1396 = vmatprep.subr.bf16.mxu0 0
        %1397 = vmatpush1.bf16.msra.mxu0 0
        %1398 = vmatprep.subr.bf16.mxu0 0
        %1399 = vmatpush1.bf16.msra.mxu0 0
        %1400 = vmatprep.subr.bf16.mxu0 0
        %1401 = vmatpush1.bf16.msra.mxu0 0
        %1402 = vmatprep.subr.bf16.mxu0 0
        %1403 = vmatpush1.bf16.msra.mxu0 0
        %1404 = vmatprep.subr.bf16.mxu0 0
        %1405 = vmatpush1.bf16.msra.mxu0 0
        %1406 = vmatprep.subr.bf16.mxu0 0
        %1407 = vmatpush1.bf16.msra.mxu0 0
        %1408 = vmatprep.subr.bf16.mxu0 0
        %1409 = vmatpush1.bf16.msra.mxu0 0
        %1410 = vmatprep.subr.bf16.mxu0 0
        %1411 = vmatpush1.bf16.msra.mxu0 0
        %1412 = vmatprep.subr.bf16.mxu0 0
        %1413 = vmatpush1.bf16.msra.mxu0 0
        %1414 = vmatprep.subr.bf16.mxu0 0
        %1415 = vmatpush1.bf16.msra.mxu0 0
        %1416 = vmatprep.mubr.bf16.mxu0 0
        %1417 = vmatmul.mubr.bf16.gmra.mrb[0].mxu0 %v1379
        %v1418 = vpop.f32.mrb[0].mxu0
        %v1419 = vadd.f32 0.0, %v1418
        %v1420 = vpop.f32.mrb[0].mxu0
        %v1421 = vpop.f32.mrb[0].mxu0
        %v1422 = vpop.f32.mrb[0].mxu0
        %1423 = vdwg.mxu0
        %v1424 = vrcp.pop %v1371
        %v1425 = vmul.f32 %v1419, %v1424
        %v1426 = vpack.c.bf16 %v1425, %v1425
        %v1428 = vunpack.c.l.b16 %v1426
        %v1429 = vpack.c.b16 %v1428, %v1428
        %1430 = vrot.lane.b32.xlu0 %v1429, 24
        %v1431 = vpop.permute.xlu0 %1430
        %vm1433 = vcmask 224448
        %1434 = vst.msk [vmem:[#allocation5] sm:$0xf] %vm1433, %v1431
        %v1435 = vld [vmem:[#allocation4] sm:$0xf]
        %v1436 = vld [vmem:[#allocation2] sm:$0xf]
        %v1437 = vld [vmem:[#allocation3] sm:$0xf]
        %v1439 = vunpack.c.l.b16 %v1435
        %v1440 = vpack.c.b16 %v1439, %v1439
        %1441 = vrot.lane.b32.xlu0 %v1440, 100
        %v1442 = vpop.permute.xlu0 %1441
        %v1444 = vunpack.c.l.b16 %v1436
        %v1445 = vpack.c.b16 %v1444, %v1444
        %1446 = vrot.lane.b32.xlu0 %v1445, 100
        %v1447 = vpop.permute.xlu0 %1446
        %v1449 = vsel %vm539, %v1442, 0
        %v1452 = vsel %vm539, %v1447, 0
        %1454 = vmatprep.subr.bf16.mxu0 0
        %1455 = vmatpush1.bf16.xpose.msra.mxu0 %v1452
        %1456 = vmatprep.subr.bf16.mxu0 0
        %1457 = vmatpush1.bf16.xpose.msra.mxu0 0
        %1458 = vmatprep.subr.bf16.mxu0 0
        %1459 = vmatpush1.bf16.xpose.msra.mxu0 0
        %1460 = vmatprep.subr.bf16.mxu0 0
        %1461 = vmatpush1.bf16.xpose.msra.mxu0 0
        %1462 = vmatprep.subr.bf16.mxu0 0
        %1463 = vmatpush1.bf16.xpose.msra.mxu0 0
        %1464 = vmatprep.subr.bf16.mxu0 0
        %1465 = vmatpush1.bf16.xpose.msra.mxu0 0
        %1466 = vmatprep.subr.bf16.mxu0 0
        %1467 = vmatpush1.bf16.xpose.msra.mxu0 0
        %1468 = vmatprep.subr.bf16.mxu0 0
        %1469 = vmatpush1.bf16.xpose.msra.mxu0 0
        %1470 = vmatprep.subr.bf16.mxu0 0
        %1471 = vmatpush1.bf16.xpose.msra.mxu0 0
        %1472 = vmatprep.subr.bf16.mxu0 0
        %1473 = vmatpush1.bf16.xpose.msra.mxu0 0
        %1474 = vmatprep.subr.bf16.mxu0 0
        %1475 = vmatpush1.bf16.xpose.msra.mxu0 0
        %1476 = vmatprep.subr.bf16.mxu0 0
        %1477 = vmatpush1.bf16.xpose.msra.mxu0 0
        %1478 = vmatprep.subr.bf16.mxu0 0
        %1479 = vmatpush1.bf16.xpose.msra.mxu0 0
        %1480 = vmatprep.subr.bf16.mxu0 0
        %1481 = vmatpush1.bf16.xpose.msra.mxu0 0
        %1482 = vmatprep.subr.bf16.mxu0 0
        %1483 = vmatpush1.bf16.xpose.msra.mxu0 0
        %1484 = vmatprep.subr.bf16.mxu0 0
        %1485 = vmatpush1.bf16.xpose.msra.mxu0 0
        %1486 = vmatprep.mubr.bf16.mxu0 0
        %1487 = vmatmul.mubr.bf16.gmra.mrb[0].mxu0 %v1449
        %v1488 = vpop.f32.mrb[0].mxu0
        %v1489 = vadd.f32 0.0, %v1488
        %v1490 = vpop.f32.mrb[0].mxu0
        %v1491 = vpop.f32.mrb[0].mxu0
        %v1492 = vpop.f32.mrb[0].mxu0
        %1493 = vdwg.mxu0
        %v1494 = vsel %vm586, %v1489, -inf
        %1495 = vmax.xlane.f32.xlu0 %v1494
        %v1496 = vpop.xlane.xlu0 %1495
        %v1497 = vsub.f32 %v1489, %v1496
        %v1498 = vmul.f32 %v1497, 1.442695
        %v1499 = vpow.pop %v1498
        %v1500 = vsel %vm586, %v1499, 0.0
        %1501 = vadd.xlane.f32.xlu0 %v1500
        %v1502 = vpop.xlane.xlu0 %1501
        %v1503 = vpack.c.bf16 %v1499, %v1499
        %v1505 = vunpack.c.l.b16 %v1437
        %v1506 = vpack.c.b16 %v1505, %v1505
        %1507 = vrot.lane.b32.xlu0 %v1506, 100
        %v1508 = vpop.permute.xlu0 %1507
        %v1510 = vsel %vm586, %v1503, 0
        %v1513 = vsel %vm600, %v1508, 0
        %1515 = vmatprep.subr.bf16.mxu0 0
        %1516 = vmatpush1.bf16.msra.mxu0 %v1513
        %1517 = vmatprep.subr.bf16.mxu0 0
        %1518 = vmatpush1.bf16.msra.mxu0 0
        %1519 = vmatprep.subr.bf16.mxu0 0
        %1520 = vmatpush1.bf16.msra.mxu0 0
        %1521 = vmatprep.subr.bf16.mxu0 0
        %1522 = vmatpush1.bf16.msra.mxu0 0
        %1523 = vmatprep.subr.bf16.mxu0 0
        %1524 = vmatpush1.bf16.msra.mxu0 0
        %1525 = vmatprep.subr.bf16.mxu0 0
        %1526 = vmatpush1.bf16.msra.mxu0 0
        %1527 = vmatprep.subr.bf16.mxu0 0
        %1528 = vmatpush1.bf16.msra.mxu0 0
        %1529 = vmatprep.subr.bf16.mxu0 0
        %1530 = vmatpush1.bf16.msra.mxu0 0
        %1531 = vmatprep.subr.bf16.mxu0 0
        %1532 = vmatpush1.bf16.msra.mxu0 0
        %1533 = vmatprep.subr.bf16.mxu0 0
        %1534 = vmatpush1.bf16.msra.mxu0 0
        %1535 = vmatprep.subr.bf16.mxu0 0
        %1536 = vmatpush1.bf16.msra.mxu0 0
        %1537 = vmatprep.subr.bf16.mxu0 0
        %1538 = vmatpush1.bf16.msra.mxu0 0
        %1539 = vmatprep.subr.bf16.mxu0 0
        %1540 = vmatpush1.bf16.msra.mxu0 0
        %1541 = vmatprep.subr.bf16.mxu0 0
        %1542 = vmatpush1.bf16.msra.mxu0 0
        %1543 = vmatprep.subr.bf16.mxu0 0
        %1544 = vmatpush1.bf16.msra.mxu0 0
        %1545 = vmatprep.subr.bf16.mxu0 0
        %1546 = vmatpush1.bf16.msra.mxu0 0
        %1547 = vmatprep.mubr.bf16.mxu0 0
        %1548 = vmatmul.mubr.bf16.gmra.mrb[0].mxu0 %v1510
        %v1549 = vpop.f32.mrb[0].mxu0
        %v1550 = vadd.f32 0.0, %v1549
        %v1551 = vpop.f32.mrb[0].mxu0
        %v1552 = vpop.f32.mrb[0].mxu0
        %v1553 = vpop.f32.mrb[0].mxu0
        %1554 = vdwg.mxu0
        %v1555 = vrcp.pop %v1502
        %v1556 = vmul.f32 %v1550, %v1555
        %v1557 = vpack.c.bf16 %v1556, %v1556
        %v1559 = vunpack.c.l.b16 %v1557
        %v1560 = vpack.c.b16 %v1559, %v1559
        %1561 = vrot.lane.b32.xlu0 %v1560, 28
        %v1562 = vpop.permute.xlu0 %1561
        %vm1564 = vcmask 257248
        %1565 = vst.msk [vmem:[#allocation5] sm:$0xf] %vm1564, %v1562
        %v1566 = vld [vmem:[#allocation5] sm:$0xf]
        %v1567 = vld [vmem:[#allocation14] sm:$0xf]
        %v1568 = vld [vmem:[#allocation14 + $0x4] sm:$0xf]
        %v1569 = vld [vmem:[#allocation14 + $0x8] sm:$0xf]
        %v1570 = vld [vmem:[#allocation14 + $0xc] sm:$0xf]
        %v1571 = vld [vmem:[%s5] sm:$0x1]
        %v1573 = vlaneseq
        %v1574 = vshrl.u32 %v1573, 7
        %v1575 = vsub.s32 0, %v1574
        %v1576 = vrot.slane %v1571, %v1575
        %v1582 = vunpack.c.l.b16 %v1567
        %v1583 = vunpack.c.l.b16 %v1568
        %v1584 = vunpack.c.l.b16 %v1569
        %v1585 = vunpack.c.l.b16 %v1570
        %v1586 = vpack.c.b16 %v1583, %v1582
        %v1587 = vpack.c.b16 %v1585, %v1584
        %v1591 = vsel %vm488, %v1566, 0
        %1593 = vmatprep.subr.bf16.mxu0 0
        %1594 = vmatpush1.bf16.msra.mxu0 %v1586
        %1595 = vmatprep.subr.bf16.mxu0 0
        %1596 = vmatpush1.bf16.msra.mxu0 %v1587
        %1597 = vmatprep.subr.bf16.mxu0 0
        %1598 = vmatpush1.bf16.msra.mxu0 0
        %1599 = vmatprep.subr.bf16.mxu0 0
        %1600 = vmatpush1.bf16.msra.mxu0 0
        %1601 = vmatprep.subr.bf16.mxu0 0
        %1602 = vmatpush1.bf16.msra.mxu0 0
        %1603 = vmatprep.subr.bf16.mxu0 0
        %1604 = vmatpush1.bf16.msra.mxu0 0
        %1605 = vmatprep.subr.bf16.mxu0 0
        %1606 = vmatpush1.bf16.msra.mxu0 0
        %1607 = vmatprep.subr.bf16.mxu0 0
        %1608 = vmatpush1.bf16.msra.mxu0 0
        %1609 = vmatprep.subr.bf16.mxu0 0
        %1610 = vmatpush1.bf16.msra.mxu0 0
        %1611 = vmatprep.subr.bf16.mxu0 0
        %1612 = vmatpush1.bf16.msra.mxu0 0
        %1613 = vmatprep.subr.bf16.mxu0 0
        %1614 = vmatpush1.bf16.msra.mxu0 0
        %1615 = vmatprep.subr.bf16.mxu0 0
        %1616 = vmatpush1.bf16.msra.mxu0 0
        %1617 = vmatprep.subr.bf16.mxu0 0
        %1618 = vmatpush1.bf16.msra.mxu0 0
        %1619 = vmatprep.subr.bf16.mxu0 0
        %1620 = vmatpush1.bf16.msra.mxu0 0
        %1621 = vmatprep.subr.bf16.mxu0 0
        %1622 = vmatpush1.bf16.msra.mxu0 0
        %1623 = vmatprep.subr.bf16.mxu0 0
        %1624 = vmatpush1.bf16.msra.mxu0 0
        %1625 = vmatprep.mubr.bf16.mxu0 0
        %1626 = vmatmul.mubr.bf16.gmra.mrb[0].mxu0 %v1591
        %v1627 = vpop.f32.mrb[0].mxu0
        %v1628 = vadd.f32 %v1576, %v1627
        %v1629 = vpop.f32.mrb[0].mxu0
        %v1630 = vpop.f32.mrb[0].mxu0
        %v1631 = vpop.f32.mrb[0].mxu0
        %1632 = vdwg.mxu0
        %1633 = vst.msk [vmem:[%s338] sm:$0xff] %vm488, %v1628
        %s1634 = sand.u32 %s178, 1
        %s1635 = scalar_lea.sflag [#allocation8], %s1634
        %s1636 = sand.u32 %s178, 1
        %s1637 = smul.addr %s1636, 8
        %s1638 = scalar_lea.vmem [#allocation15], %s1637
        // Predicated region
        $region69: #{tpu_custom_call.1} parent=43 // pred_check
          %p1639 = pneg %p188
        $region70: #{tpu_custom_call.1} parent=43 // pred_check_branch
          %1641 = sbr.rel (%p1639) target = $region72
        $region71: #{tpu_custom_call.1} parent=43 // pred_region
          %s1643 = ssub.s32 128, 128
          %1644 = vsyncadd %s1635, %s1643
          %s1645 = sadd.s32 %s30, %s29
          %s1646 = smul.addr %s1645, 128
          %s1647 = scalar_lea.hbm %s6, %s1646
          %s1649 = sshll.u32 %s1638, 4
          %s1650 = int_to_ptr.vmem [resolvable:$true] %s1649
          %1652 = dma.vmem_to_hbm [thread:$0]  %s1650, 128, %s1647, %s1635
        $region72: #{tpu_custom_call.1} parent=43 // pred_fallthru
          _
      $region44: #{tpu_custom_call.1} parent=5 // pred_fallthru
        _
      %p1653 = scmp.le.s32.totalorder 2, %s20
      // Predicated region
      $region73: #{tpu_custom_call.1} parent=5 // pred_check
        %p1654 = pneg %p1653
      $region74: #{tpu_custom_call.1} parent=5 // pred_check_branch
        %1656 = sbr.rel (%p1654) target = $region76
      $region75: #{tpu_custom_call.1} parent=5 // pred_region
        %s1657 = ssub.s32 %s20, 2
        // Predicated region
        $region77: #{tpu_custom_call.1} parent=75 // pred_check
          %p1658 = pneg %p194
        $region78: #{tpu_custom_call.1} parent=75 // pred_check_branch
          %1660 = sbr.rel (%p1658) target = $region80
        $region79: #{tpu_custom_call.1} parent=75 // pred_region
          %s1661 = sand.u32 %s179, 1
          %s1662 = scalar_lea.sflag [#allocation8], %s1661
          %s1663 = sand.u32 %s179, 1
          %s1664 = smul.addr %s1663, 8
          %s1665 = scalar_lea.vmem [#allocation15], %s1664
          %1666 = dma.done %s1662, 128
        $region80: #{tpu_custom_call.1} parent=75 // pred_fallthru
          _
      $region76: #{tpu_custom_call.1} parent=5 // pred_fallthru
        _
    $region6: #{tpu_custom_call.1} parent=1 // loop_footer
      %s24 = sadd.s32 1, %s20
    $region7: #{tpu_custom_call.1} parent=1 // loop_footer_branch
      %19 = sbr.rel target = $region3
    $region8: #{tpu_custom_call.1} parent=1 // loop_exit
      _
    %1667 = vsyncpa [#allocation7], 1
    %s1668 = scalar_lea.sflag [#allocation7], 1
    %1669 = vsyncpa %s1668, 1
    %1670 = vsyncpa [#allocation10], 1
    %1671 = vsyncpa [#allocation13], 1
    %1672 = vsyncpa [#allocation8], 1
    %s1673 = scalar_lea.sflag [#allocation8], 1
    %1674 = vsyncpa %s1673, 1

</llo_original>
